<compile_context>
chip_gen: v7x
topology: tpu7x:2x2x1
jax: 0.10.0
libtpu: 0.0.40
codegen_flags: <defaults>
</compile_context>

<pallas_src>
import math
import jax
import jax.numpy as jnp
from jax.experimental import pallas as pl
from jax.experimental.pallas import tpu as pltpu

# ---- small synthetic config (hidden=32, attn_heads=4, ff=4*hidden) ----
BATCH = 2
SEQ = 8
HIDDEN = 32
HEADS = 4
DK = HIDDEN // HEADS
FF = 4 * HIDDEN          # == 128, fits one packed 128-lane row exactly
TOKENS = BATCH * SEQ
EPS = 1e-6               # BERT-pytorch LayerNorm eps (added to std, not var)
NEG = -1e9

# rows of the packed [8, 128] small-parameter block
_R_BQKV, _R_BO, _R_G1, _R_BE1, _R_B1, _R_B2, _R_G2, _R_BE2 = range(8)


def _layer_norm(v, g, b):
    # matches BERT-pytorch LayerNorm: unbiased std, eps added to std.
    # The broadcast divide is replaced by an EUP reciprocal on the [T,1] column + VALU multiply.
    mean = jnp.mean(v, axis=-1, keepdims=True)
    var = jnp.sum((v - mean) ** 2, axis=-1, keepdims=True) / (HIDDEN - 1)
    inv = pl.reciprocal(jnp.sqrt(var) + EPS, approx=True)
    return g * (v - mean) * inv + b


def transformer_block_kernel(x_ref, bias_ref, wqkv_ref, woh_ref, w1_ref, w2_ref, vec_ref, o_ref):
    x = x_ref[...]            # [T, H] f32  — all tokens of all batches as one 2-D slab
    bias = bias_ref[...]      # [T, T] f32  — additive mask (-1e9 on padded keys / cross-batch)
    vp = vec_ref[...]         # [8, 128] f32 packed small params (biases / LN vectors)

    # ---------------- input sublayer: x + MultiHeadAttention(LayerNorm(x)) ----------------
    xn = _layer_norm(x, vp[_R_G1:_R_G1 + 1, :HIDDEN], vp[_R_BE1:_R_BE1 + 1, :HIDDEN])

    # fused, lane-padded QKV projection: one [T,H] x [H,128] bf16 matmul, f32 accumulate
    # (1/sqrt(dk) is folded into the Q weight/bias at parameter-packing time)
    qkv = jnp.dot(xn.astype(jnp.bfloat16), wqkv_ref[...],
                  preferred_element_type=jnp.float32) + vp[_R_BQKV:_R_BQKV + 1, :]     # [T,128] f32
    qkv_b = qkv.astype(jnp.bfloat16)                                                   # MXU inputs

    # head split -> [HEADS, T, DK] per projection (aligned lane slices + leading-axis stack)
    def heads(p):
        return jnp.stack(
            [qkv_b[:, p * HIDDEN + h * DK: p * HIDDEN + (h + 1) * DK] for h in range(HEADS)],
            axis=0)
    qh, kh, vh = heads(0), heads(1), heads(2)

    # batched attention over all heads at once; scores / softmax stay f32
    scores = jnp.einsum('hsd,htd->hst', qh, kh, preferred_element_type=jnp.float32)    # [HEADS,T,T]
    scores = scores + bias[None, :, :]
    m = jnp.max(scores, axis=-1, keepdims=True)
    e = jnp.exp(scores - m)
    p = e * pl.reciprocal(jnp.sum(e, axis=-1, keepdims=True), approx=True)             # EUP recip
    ctx = jnp.einsum('hst,htd->hsd', p.astype(jnp.bfloat16), vh,
                     preferred_element_type=jnp.float32)                               # [HEADS,T,DK]

    # output projection: accumulate per-head [T,DK] @ [DK,H] dots straight into one f32
    # accumulator — no [HEADS,T,H] temporary and no leading-axis reduce.
    attn = jnp.zeros((TOKENS, HIDDEN), jnp.float32)
    for h in range(HEADS):
        attn = attn + jnp.dot(ctx[h].astype(jnp.bfloat16), woh_ref[h],
                              preferred_element_type=jnp.float32)
    attn = attn + vp[_R_BO:_R_BO + 1, :HIDDEN]                                         # [T, H]
    x1 = x + attn                                     # attention-path dropout == identity

    # ---------------- output sublayer: x1 + PositionwiseFeedForward(LayerNorm(x1)) --------
    xn2 = _layer_norm(x1, vp[_R_G2:_R_G2 + 1, :HIDDEN], vp[_R_BE2:_R_BE2 + 1, :HIDDEN])
    hdn = jnp.dot(xn2.astype(jnp.bfloat16), w1_ref[...],
                  preferred_element_type=jnp.float32) + vp[_R_B1:_R_B1 + 1, :FF]       # [T, FF] f32
    # GELU (tanh approximation, as used in BERT-pytorch) — f32 elementwise
    hdn = 0.5 * hdn * (1.0 + jnp.tanh(0.7978845608028654 * (hdn + 0.044715 * hdn * hdn * hdn)))
    ff = jnp.dot(hdn.astype(jnp.bfloat16), w2_ref[...],
                 preferred_element_type=jnp.float32) + vp[_R_B2:_R_B2 + 1, :HIDDEN]    # [T, H] f32
    o_ref[...] = x1 + ff                              # FFN dropout + final dropout == identity


# ------------------------- init-time packing (hoisted out of the call path) -------------------------
def _pack_params(params):
    """Fold 1/sqrt(dk) into Wq/bq, fuse QKV weights (lane-padded to 128), split Wo per head,
    cast all matmul weights to bf16 (MXU-native), and pack the 8 small vectors into one
    f32 [8, 128] block.  Runs ONCE at build time, never on the per-call path."""
    scale = 1.0 / math.sqrt(DK)
    zeros_h = jnp.zeros((HIDDEN, HIDDEN), jnp.float32)
    wqkv = jnp.concatenate(
        [params["wq"] * scale, params["wk"], params["wv"], zeros_h], axis=1
    ).astype(jnp.bfloat16)                                                     # [H, 128] bf16
    woh = params["wo"].reshape(HEADS, DK, HIDDEN).astype(jnp.bfloat16)         # [HEADS, DK, H] bf16
    w1 = params["w1"].astype(jnp.bfloat16)                                     # [H, FF]  bf16
    w2 = params["w2"].astype(jnp.bfloat16)                                     # [FF, H]  bf16

    def row(v):
        v = v.reshape(1, -1).astype(jnp.float32)
        return jnp.pad(v, ((0, 0), (0, 128 - v.shape[1])))

    vec = jnp.concatenate([
        row(jnp.concatenate([params["bq"] * scale, params["bk"], params["bv"]], axis=1)),
        row(params["bo"]), row(params["g1"]), row(params["be1"]),
        row(params["b1"]), row(params["b2"]), row(params["g2"]), row(params["be2"]),
    ], axis=0)                                                                 # [8, 128] f32
    return wqkv, woh, w1, w2, vec


def _mask_bias(mask):
    """Additive attention bias over the merged [T, T] token slab:
    -1e9 where the per-batch mask is 0, -1e9 across batch boundaries, 0 elsewhere.
    (Every query row keeps at least one valid key in its own batch block, so the -1e9 +
    max-subtraction softmax never sees an all-masked row.)"""
    B, S, _ = mask.shape
    blocks = jnp.where(mask == 0, NEG, 0.0).astype(jnp.float32)                # [B, S, S]
    same_b = jnp.eye(B, dtype=bool)[:, None, :, None]                          # [B, 1, B, 1]
    return jnp.where(same_b, blocks[:, :, None, :], NEG).reshape(B * S, B * S)  # [T, T]


def build_transformer_block(params, mask):
    """Pack parameters and the mask bias ONCE; return a jitted forward(x) whose only per-call
    work is a reshape + a single un-pipelined pallas_call."""
    wqkv, woh, w1, w2, vec = _pack_params(params)
    bias = _mask_bias(mask)
    B, S, _ = mask.shape
    T = B * S

    # Whole arrays resident in VMEM for one kernel invocation (total footprint < 100 KiB).
    # No grid => no pipeline => no default double-buffering of the operands.
    vmem = pl.BlockSpec(memory_space=pltpu.MemorySpace.VMEM)
    call = pl.pallas_call(
        transformer_block_kernel,
        out_shape=jax.ShapeDtypeStruct((T, HIDDEN), jnp.float32),
        in_specs=[vmem] * 7,
        out_specs=vmem,
    )

    @jax.jit
    def forward(x):
        x2d = x.reshape(T, HIDDEN).astype(jnp.float32)
        return call(x2d, bias, wqkv, woh, w1, w2, vec).reshape(B, S, HIDDEN)

    return forward


# ------------------------------ pure-JAX reference ------------------------------
def reference(x, mask, p):
    def ln(v, g, b):
        mean = v.mean(-1, keepdims=True)
        var = ((v - mean) ** 2).sum(-1, keepdims=True) / (HIDDEN - 1)
        return g * (v - mean) / (jnp.sqrt(var) + EPS) + b

    B, S, H = x.shape
    xn = ln(x, p["g1"], p["be1"])
    q = xn @ p["wq"] + p["bq"]
    k = xn @ p["wk"] + p["bk"]
    v = xn @ p["wv"] + p["bv"]
    qh = q.reshape(B, S, HEADS, DK).transpose(0, 2, 1, 3)
    kh = k.reshape(B, S, HEADS, DK).transpose(0, 2, 1, 3)
    vh = v.reshape(B, S, HEADS, DK).transpose(0, 2, 1, 3)
    scores = (qh @ kh.transpose(0, 1, 3, 2)) / math.sqrt(DK)
    scores = jnp.where(mask[:, None] == 0, NEG, scores)
    attn = jax.nn.softmax(scores, axis=-1)
    ctx = (attn @ vh).transpose(0, 2, 1, 3).reshape(B, S, H)
    x1 = x + (ctx @ p["wo"] + p["bo"])
    xn2 = ln(x1, p["g2"], p["be2"])
    hdn = xn2 @ p["w1"] + p["b1"]
    hdn = 0.5 * hdn * (1.0 + jnp.tanh(0.7978845608028654 * (hdn + 0.044715 * hdn ** 3)))
    return x1 + (hdn @ p["w2"] + p["b2"])


def init_params(key):
    ks = jax.random.split(key, 12)

    def w(k, shape, fan_in):
        return (jax.random.normal(k, shape, jnp.float32) / math.sqrt(fan_in)).astype(jnp.float32)

    return {
        # attention projections stored as [in, out] (i.e. PyTorch W^T)
        "wq": w(ks[0], (HIDDEN, HIDDEN), HIDDEN), "bq": w(ks[1], (1, HIDDEN), HIDDEN),
        "wk": w(ks[2], (HIDDEN, HIDDEN), HIDDEN), "bk": w(ks[3], (1, HIDDEN), HIDDEN),
        "wv": w(ks[4], (HIDDEN, HIDDEN), HIDDEN), "bv": w(ks[5], (1, HIDDEN), HIDDEN),
        "wo": w(ks[6], (HIDDEN, HIDDEN), HIDDEN), "bo": w(ks[7], (1, HIDDEN), HIDDEN),
        "g1": jnp.ones((1, HIDDEN), jnp.float32), "be1": jnp.zeros((1, HIDDEN), jnp.float32),
        "w1": w(ks[8], (HIDDEN, FF), HIDDEN), "b1": w(ks[9], (1, FF), HIDDEN),
        "w2": w(ks[10], (FF, HIDDEN), FF), "b2": w(ks[11], (1, HIDDEN), FF),
        "g2": jnp.ones((1, HIDDEN), jnp.float32), "be2": jnp.zeros((1, HIDDEN), jnp.float32),
    }


if __name__ == "__main__":
    key = jax.random.PRNGKey(0)
    kx, kp = jax.random.split(key)
    x = jax.random.normal(kx, (BATCH, SEQ, HIDDEN), jnp.float32)

    # key-padding mask like BERT: mask[b, i, j] = 1 if token j is valid (lengths 8 and 5)
    lengths = jnp.array([SEQ, 5], dtype=jnp.int32)
    valid = (jnp.arange(SEQ)[None, :] < lengths[:, None]).astype(jnp.float32)   # [B, S]
    mask = jnp.broadcast_to(valid[:, None, :], (BATCH, SEQ, SEQ))               # [B, S, S]

    params = init_params(kp)

    fwd = build_transformer_block(params, mask)   # packing + bias built ONCE here
    out = jax.block_until_ready(fwd(x))

    ref = reference(x, mask, params)
    assert out.shape == (BATCH, SEQ, HIDDEN)
    # Tolerance accounts for bf16 MXU operands (f32 accumulation) and the approximate EUP
    # reciprocals in LayerNorm / softmax; the f32 reference is otherwise matched exactly.
    assert jnp.allclose(out, ref, rtol=3e-2, atol=3e-2), "mismatch vs pure-JAX reference"

    print("KERNEL_OK")
</pallas_src>

<mosaic_0001>
module attributes {stable_mosaic.version = 11 : i64} {
  func.func @transformer_block_kernel(%arg0: memref<16x32xf32, #tpu.memory_space<vmem>>, %arg1: memref<16x16xf32, #tpu.memory_space<vmem>>, %arg2: memref<32x128xbf16, #tpu.memory_space<vmem>>, %arg3: memref<4x8x32xbf16, #tpu.memory_space<vmem>>, %arg4: memref<32x128xbf16, #tpu.memory_space<vmem>>, %arg5: memref<128x32xbf16, #tpu.memory_space<vmem>>, %arg6: memref<8x128xf32, #tpu.memory_space<vmem>>, %arg7: memref<16x32xf32, #tpu.memory_space<vmem>>) attributes {dimension_semantics = [], scalar_prefetch = 0 : i64, scratch_operands = 0 : i64, tpu.core_type = #tpu.core_type<tc>} {
    %c0 = arith.constant 0 : index
    %c0_0 = arith.constant 0 : index
    %0 = vector.load %arg0[%c0, %c0_0] : memref<16x32xf32, #tpu.memory_space<vmem>>, vector<16x32xf32>
    %c0_1 = arith.constant 0 : index
    %c0_2 = arith.constant 0 : index
    %1 = vector.load %arg1[%c0_1, %c0_2] : memref<16x16xf32, #tpu.memory_space<vmem>>, vector<16x16xf32>
    %c0_3 = arith.constant 0 : index
    %c0_4 = arith.constant 0 : index
    %2 = vector.load %arg6[%c0_3, %c0_4] : memref<8x128xf32, #tpu.memory_space<vmem>>, vector<8x128xf32>
    %3 = vector.extract_strided_slice %2 {offsets = [2, 0], sizes = [1, 32], strides = [1, 1]} : vector<8x128xf32> to vector<1x32xf32>
    %4 = vector.extract_strided_slice %2 {offsets = [3, 0], sizes = [1, 32], strides = [1, 1]} : vector<8x128xf32> to vector<1x32xf32>
    %cst = arith.constant dense<0.000000e+00> : vector<16xf32>
    %5 = vector.multi_reduction <add>, %0, %cst [1] : vector<16x32xf32> to vector<16xf32>
    %6 = vector.shape_cast %5 : vector<16xf32> to vector<16x1xf32>
    %cst_5 = arith.constant 3.200000e+01 : f32
    %7 = vector.broadcast %cst_5 : f32 to vector<16x1xf32>
    %8 = arith.divf %6, %7 : vector<16x1xf32>
    %9 = vector.broadcast %8 : vector<16x1xf32> to vector<16x32xf32>
    %10 = arith.subf %0, %9 : vector<16x32xf32>
    %11 = arith.mulf %10, %10 : vector<16x32xf32>
    %cst_6 = arith.constant dense<0.000000e+00> : vector<16xf32>
    %12 = vector.multi_reduction <add>, %11, %cst_6 [1] : vector<16x32xf32> to vector<16xf32>
    %13 = vector.shape_cast %12 : vector<16xf32> to vector<16x1xf32>
    %cst_7 = arith.constant 3.100000e+01 : f32
    %14 = vector.broadcast %cst_7 : f32 to vector<16x1xf32>
    %15 = arith.divf %13, %14 : vector<16x1xf32>
    %16 = math.sqrt %15 : vector<16x1xf32>
    %cst_8 = arith.constant 9.99999997E-7 : f32
    %17 = vector.broadcast %cst_8 : f32 to vector<16x1xf32>
    %18 = arith.addf %16, %17 : vector<16x1xf32>
    %19 = tpu.reciprocal %18 {approx = true} : vector<16x1xf32> -> vector<16x1xf32>
    %20 = vector.broadcast %8 : vector<16x1xf32> to vector<16x32xf32>
    %21 = arith.subf %0, %20 : vector<16x32xf32>
    %22 = vector.broadcast %3 : vector<1x32xf32> to vector<16x32xf32>
    %23 = arith.mulf %22, %21 : vector<16x32xf32>
    %24 = vector.broadcast %19 : vector<16x1xf32> to vector<16x32xf32>
    %25 = arith.mulf %23, %24 : vector<16x32xf32>
    %26 = vector.broadcast %4 : vector<1x32xf32> to vector<16x32xf32>
    %27 = arith.addf %25, %26 : vector<16x32xf32>
    %28 = arith.truncf %27 : vector<16x32xf32> to vector<16x32xbf16>
    %c0_9 = arith.constant 0 : index
    %c0_10 = arith.constant 0 : index
    %29 = vector.load %arg2[%c0_9, %c0_10] : memref<32x128xbf16, #tpu.memory_space<vmem>>, vector<32x128xbf16>
    %cst_11 = arith.constant dense<0.000000e+00> : vector<16x128xf32>
    %30 = tpu.matmul %28, %29, %cst_11 {dimension_numbers = #tpu.dot_dimension_numbers<[1], [0], [0], [1], [0, 0, 1, 1], [], []>} : vector<16x32xbf16>, vector<32x128xbf16>, vector<16x128xf32> -> vector<16x128xf32>
    %31 = vector.extract_strided_slice %2 {offsets = [0, 0], sizes = [1, 128], strides = [1, 1]} : vector<8x128xf32> to vector<1x128xf32>
    %32 = vector.broadcast %31 : vector<1x128xf32> to vector<16x128xf32>
    %33 = arith.addf %30, %32 : vector<16x128xf32>
    %34 = arith.truncf %33 : vector<16x128xf32> to vector<16x128xbf16>
    %35 = vector.extract_strided_slice %34 {offsets = [0, 0], sizes = [16, 8], strides = [1, 1]} : vector<16x128xbf16> to vector<16x8xbf16>
    %36 = vector.extract_strided_slice %34 {offsets = [0, 8], sizes = [16, 8], strides = [1, 1]} : vector<16x128xbf16> to vector<16x8xbf16>
    %37 = vector.extract_strided_slice %34 {offsets = [0, 16], sizes = [16, 8], strides = [1, 1]} : vector<16x128xbf16> to vector<16x8xbf16>
    %38 = vector.extract_strided_slice %34 {offsets = [0, 24], sizes = [16, 8], strides = [1, 1]} : vector<16x128xbf16> to vector<16x8xbf16>
    %39 = vector.shape_cast %35 : vector<16x8xbf16> to vector<1x16x8xbf16>
    %40 = vector.shape_cast %36 : vector<16x8xbf16> to vector<1x16x8xbf16>
    %41 = vector.shape_cast %37 : vector<16x8xbf16> to vector<1x16x8xbf16>
    %42 = vector.shape_cast %38 : vector<16x8xbf16> to vector<1x16x8xbf16>
    %43 = tpu.concatenate %39, %40, %41, %42 in 0 : vector<1x16x8xbf16>, vector<1x16x8xbf16>, vector<1x16x8xbf16>, vector<1x16x8xbf16> -> vector<4x16x8xbf16>
    %44 = vector.extract_strided_slice %34 {offsets = [0, 32], sizes = [16, 8], strides = [1, 1]} : vector<16x128xbf16> to vector<16x8xbf16>
    %45 = vector.extract_strided_slice %34 {offsets = [0, 40], sizes = [16, 8], strides = [1, 1]} : vector<16x128xbf16> to vector<16x8xbf16>
    %46 = vector.extract_strided_slice %34 {offsets = [0, 48], sizes = [16, 8], strides = [1, 1]} : vector<16x128xbf16> to vector<16x8xbf16>
    %47 = vector.extract_strided_slice %34 {offsets = [0, 56], sizes = [16, 8], strides = [1, 1]} : vector<16x128xbf16> to vector<16x8xbf16>
    %48 = vector.shape_cast %44 : vector<16x8xbf16> to vector<1x16x8xbf16>
    %49 = vector.shape_cast %45 : vector<16x8xbf16> to vector<1x16x8xbf16>
    %50 = vector.shape_cast %46 : vector<16x8xbf16> to vector<1x16x8xbf16>
    %51 = vector.shape_cast %47 : vector<16x8xbf16> to vector<1x16x8xbf16>
    %52 = tpu.concatenate %48, %49, %50, %51 in 0 : vector<1x16x8xbf16>, vector<1x16x8xbf16>, vector<1x16x8xbf16>, vector<1x16x8xbf16> -> vector<4x16x8xbf16>
    %53 = vector.extract_strided_slice %34 {offsets = [0, 64], sizes = [16, 8], strides = [1, 1]} : vector<16x128xbf16> to vector<16x8xbf16>
    %54 = vector.extract_strided_slice %34 {offsets = [0, 72], sizes = [16, 8], strides = [1, 1]} : vector<16x128xbf16> to vector<16x8xbf16>
    %55 = vector.extract_strided_slice %34 {offsets = [0, 80], sizes = [16, 8], strides = [1, 1]} : vector<16x128xbf16> to vector<16x8xbf16>
    %56 = vector.extract_strided_slice %34 {offsets = [0, 88], sizes = [16, 8], strides = [1, 1]} : vector<16x128xbf16> to vector<16x8xbf16>
    %57 = vector.shape_cast %53 : vector<16x8xbf16> to vector<1x16x8xbf16>
    %58 = vector.shape_cast %54 : vector<16x8xbf16> to vector<1x16x8xbf16>
    %59 = vector.shape_cast %55 : vector<16x8xbf16> to vector<1x16x8xbf16>
    %60 = vector.shape_cast %56 : vector<16x8xbf16> to vector<1x16x8xbf16>
    %61 = tpu.concatenate %57, %58, %59, %60 in 0 : vector<1x16x8xbf16>, vector<1x16x8xbf16>, vector<1x16x8xbf16>, vector<1x16x8xbf16> -> vector<4x16x8xbf16>
    "tpu.trace_start"() <{level = 10 : i32, message = "hsd,htd->hst"}> : () -> ()
    %cst_12 = arith.constant dense<0.000000e+00> : vector<4x16x16xf32>
    %62 = tpu.matmul %43, %52, %cst_12 {dimension_numbers = #tpu.dot_dimension_numbers<[2], [2], [1], [1], [0, 0, 0, 1, 1, 1], [0], [0]>} : vector<4x16x8xbf16>, vector<4x16x8xbf16>, vector<4x16x16xf32> -> vector<4x16x16xf32>
    "tpu.trace_stop"() : () -> ()
    %63 = vector.shape_cast %1 : vector<16x16xf32> to vector<1x16x16xf32>
    %64 = vector.broadcast %63 : vector<1x16x16xf32> to vector<4x16x16xf32>
    %65 = arith.addf %62, %64 : vector<4x16x16xf32>
    %cst_13 = arith.constant dense<0xFF800000> : vector<4x16xf32>
    %66 = vector.multi_reduction <maximumf>, %65, %cst_13 [2] : vector<4x16x16xf32> to vector<4x16xf32>
    %67 = vector.shape_cast %66 : vector<4x16xf32> to vector<4x16x1xf32>
    %68 = vector.broadcast %67 : vector<4x16x1xf32> to vector<4x16x16xf32>
    %69 = arith.subf %65, %68 : vector<4x16x16xf32>
    %70 = math.exp %69 : vector<4x16x16xf32>
    %cst_14 = arith.constant dense<0.000000e+00> : vector<4x16xf32>
    %71 = vector.multi_reduction <add>, %70, %cst_14 [2] : vector<4x16x16xf32> to vector<4x16xf32>
    %72 = vector.shape_cast %71 : vector<4x16xf32> to vector<4x16x1xf32>
    %73 = tpu.reciprocal %72 {approx = true} : vector<4x16x1xf32> -> vector<4x16x1xf32>
    %74 = vector.broadcast %73 : vector<4x16x1xf32> to vector<4x16x16xf32>
    %75 = arith.mulf %70, %74 : vector<4x16x16xf32>
    %76 = arith.truncf %75 : vector<4x16x16xf32> to vector<4x16x16xbf16>
    "tpu.trace_start"() <{level = 10 : i32, message = "hst,htd->hsd"}> : () -> ()
    %cst_15 = arith.constant dense<0.000000e+00> : vector<4x16x8xf32>
    %77 = tpu.matmul %76, %61, %cst_15 {dimension_numbers = #tpu.dot_dimension_numbers<[2], [1], [1], [2], [0, 0, 0, 1, 1, 2], [0], [0]>} : vector<4x16x16xbf16>, vector<4x16x8xbf16>, vector<4x16x8xf32> -> vector<4x16x8xf32>
    %cst_16 = arith.constant 0.000000e+00 : f32
    "tpu.trace_stop"() : () -> ()
    %78 = vector.broadcast %cst_16 : f32 to vector<16x32xf32>
    %79 = vector.extract_strided_slice %77 {offsets = [0, 0, 0], sizes = [1, 16, 8], strides = [1, 1, 1]} : vector<4x16x8xf32> to vector<1x16x8xf32>
    %80 = vector.shape_cast %79 : vector<1x16x8xf32> to vector<16x8xf32>
    %81 = arith.truncf %80 : vector<16x8xf32> to vector<16x8xbf16>
    %c0_17 = arith.constant 0 : index
    %c0_18 = arith.constant 0 : index
    %c0_19 = arith.constant 0 : index
    %82 = vector.load %arg3[%c0_17, %c0_18, %c0_19] : memref<4x8x32xbf16, #tpu.memory_space<vmem>>, vector<1x8x32xbf16>
    %83 = vector.shape_cast %82 : vector<1x8x32xbf16> to vector<8x32xbf16>
    %cst_20 = arith.constant dense<0.000000e+00> : vector<16x32xf32>
    %84 = tpu.matmul %81, %83, %cst_20 {dimension_numbers = #tpu.dot_dimension_numbers<[1], [0], [0], [1], [0, 0, 1, 1], [], []>} : vector<16x8xbf16>, vector<8x32xbf16>, vector<16x32xf32> -> vector<16x32xf32>
    %85 = arith.addf %78, %84 : vector<16x32xf32>
    %86 = vector.extract_strided_slice %77 {offsets = [1, 0, 0], sizes = [1, 16, 8], strides = [1, 1, 1]} : vector<4x16x8xf32> to vector<1x16x8xf32>
    %87 = vector.shape_cast %86 : vector<1x16x8xf32> to vector<16x8xf32>
    %88 = arith.truncf %87 : vector<16x8xf32> to vector<16x8xbf16>
    %c1 = arith.constant 1 : index
    %c0_21 = arith.constant 0 : index
    %c0_22 = arith.constant 0 : index
    %89 = vector.load %arg3[%c1, %c0_21, %c0_22] : memref<4x8x32xbf16, #tpu.memory_space<vmem>>, vector<1x8x32xbf16>
    %90 = vector.shape_cast %89 : vector<1x8x32xbf16> to vector<8x32xbf16>
    %cst_23 = arith.constant dense<0.000000e+00> : vector<16x32xf32>
    %91 = tpu.matmul %88, %90, %cst_23 {dimension_numbers = #tpu.dot_dimension_numbers<[1], [0], [0], [1], [0, 0, 1, 1], [], []>} : vector<16x8xbf16>, vector<8x32xbf16>, vector<16x32xf32> -> vector<16x32xf32>
    %92 = arith.addf %85, %91 : vector<16x32xf32>
    %93 = vector.extract_strided_slice %77 {offsets = [2, 0, 0], sizes = [1, 16, 8], strides = [1, 1, 1]} : vector<4x16x8xf32> to vector<1x16x8xf32>
    %94 = vector.shape_cast %93 : vector<1x16x8xf32> to vector<16x8xf32>
    %95 = arith.truncf %94 : vector<16x8xf32> to vector<16x8xbf16>
    %c2 = arith.constant 2 : index
    %c0_24 = arith.constant 0 : index
    %c0_25 = arith.constant 0 : index
    %96 = vector.load %arg3[%c2, %c0_24, %c0_25] : memref<4x8x32xbf16, #tpu.memory_space<vmem>>, vector<1x8x32xbf16>
    %97 = vector.shape_cast %96 : vector<1x8x32xbf16> to vector<8x32xbf16>
    %cst_26 = arith.constant dense<0.000000e+00> : vector<16x32xf32>
    %98 = tpu.matmul %95, %97, %cst_26 {dimension_numbers = #tpu.dot_dimension_numbers<[1], [0], [0], [1], [0, 0, 1, 1], [], []>} : vector<16x8xbf16>, vector<8x32xbf16>, vector<16x32xf32> -> vector<16x32xf32>
    %99 = arith.addf %92, %98 : vector<16x32xf32>
    %100 = vector.extract_strided_slice %77 {offsets = [3, 0, 0], sizes = [1, 16, 8], strides = [1, 1, 1]} : vector<4x16x8xf32> to vector<1x16x8xf32>
    %101 = vector.shape_cast %100 : vector<1x16x8xf32> to vector<16x8xf32>
    %102 = arith.truncf %101 : vector<16x8xf32> to vector<16x8xbf16>
    %c3 = arith.constant 3 : index
    %c0_27 = arith.constant 0 : index
    %c0_28 = arith.constant 0 : index
    %103 = vector.load %arg3[%c3, %c0_27, %c0_28] : memref<4x8x32xbf16, #tpu.memory_space<vmem>>, vector<1x8x32xbf16>
    %104 = vector.shape_cast %103 : vector<1x8x32xbf16> to vector<8x32xbf16>
    %cst_29 = arith.constant dense<0.000000e+00> : vector<16x32xf32>
    %105 = tpu.matmul %102, %104, %cst_29 {dimension_numbers = #tpu.dot_dimension_numbers<[1], [0], [0], [1], [0, 0, 1, 1], [], []>} : vector<16x8xbf16>, vector<8x32xbf16>, vector<16x32xf32> -> vector<16x32xf32>
    %106 = arith.addf %99, %105 : vector<16x32xf32>
    %107 = vector.extract_strided_slice %2 {offsets = [1, 0], sizes = [1, 32], strides = [1, 1]} : vector<8x128xf32> to vector<1x32xf32>
    %108 = vector.broadcast %107 : vector<1x32xf32> to vector<16x32xf32>
    %109 = arith.addf %106, %108 : vector<16x32xf32>
    %110 = arith.addf %0, %109 : vector<16x32xf32>
    %111 = vector.extract_strided_slice %2 {offsets = [6, 0], sizes = [1, 32], strides = [1, 1]} : vector<8x128xf32> to vector<1x32xf32>
    %112 = vector.extract_strided_slice %2 {offsets = [7, 0], sizes = [1, 32], strides = [1, 1]} : vector<8x128xf32> to vector<1x32xf32>
    %cst_30 = arith.constant dense<0.000000e+00> : vector<16xf32>
    %113 = vector.multi_reduction <add>, %110, %cst_30 [1] : vector<16x32xf32> to vector<16xf32>
    %114 = vector.shape_cast %113 : vector<16xf32> to vector<16x1xf32>
    %cst_31 = arith.constant 3.200000e+01 : f32
    %115 = vector.broadcast %cst_31 : f32 to vector<16x1xf32>
    %116 = arith.divf %114, %115 : vector<16x1xf32>
    %117 = vector.broadcast %116 : vector<16x1xf32> to vector<16x32xf32>
    %118 = arith.subf %110, %117 : vector<16x32xf32>
    %119 = arith.mulf %118, %118 : vector<16x32xf32>
    %cst_32 = arith.constant dense<0.000000e+00> : vector<16xf32>
    %120 = vector.multi_reduction <add>, %119, %cst_32 [1] : vector<16x32xf32> to vector<16xf32>
    %121 = vector.shape_cast %120 : vector<16xf32> to vector<16x1xf32>
    %cst_33 = arith.constant 3.100000e+01 : f32
    %122 = vector.broadcast %cst_33 : f32 to vector<16x1xf32>
    %123 = arith.divf %121, %122 : vector<16x1xf32>
    %124 = math.sqrt %123 : vector<16x1xf32>
    %cst_34 = arith.constant 9.99999997E-7 : f32
    %125 = vector.broadcast %cst_34 : f32 to vector<16x1xf32>
    %126 = arith.addf %124, %125 : vector<16x1xf32>
    %127 = tpu.reciprocal %126 {approx = true} : vector<16x1xf32> -> vector<16x1xf32>
    %128 = vector.broadcast %116 : vector<16x1xf32> to vector<16x32xf32>
    %129 = arith.subf %110, %128 : vector<16x32xf32>
    %130 = vector.broadcast %111 : vector<1x32xf32> to vector<16x32xf32>
    %131 = arith.mulf %130, %129 : vector<16x32xf32>
    %132 = vector.broadcast %127 : vector<16x1xf32> to vector<16x32xf32>
    %133 = arith.mulf %131, %132 : vector<16x32xf32>
    %134 = vector.broadcast %112 : vector<1x32xf32> to vector<16x32xf32>
    %135 = arith.addf %133, %134 : vector<16x32xf32>
    %136 = arith.truncf %135 : vector<16x32xf32> to vector<16x32xbf16>
    %c0_35 = arith.constant 0 : index
    %c0_36 = arith.constant 0 : index
    %137 = vector.load %arg4[%c0_35, %c0_36] : memref<32x128xbf16, #tpu.memory_space<vmem>>, vector<32x128xbf16>
    %cst_37 = arith.constant dense<0.000000e+00> : vector<16x128xf32>
    %138 = tpu.matmul %136, %137, %cst_37 {dimension_numbers = #tpu.dot_dimension_numbers<[1], [0], [0], [1], [0, 0, 1, 1], [], []>} : vector<16x32xbf16>, vector<32x128xbf16>, vector<16x128xf32> -> vector<16x128xf32>
    %139 = vector.extract_strided_slice %2 {offsets = [4, 0], sizes = [1, 128], strides = [1, 1]} : vector<8x128xf32> to vector<1x128xf32>
    %140 = vector.broadcast %139 : vector<1x128xf32> to vector<16x128xf32>
    %141 = arith.addf %138, %140 : vector<16x128xf32>
    %cst_38 = arith.constant 5.000000e-01 : f32
    %142 = vector.broadcast %cst_38 : f32 to vector<16x128xf32>
    %143 = arith.mulf %142, %141 : vector<16x128xf32>
    %cst_39 = arith.constant 4.471500e-02 : f32
    %144 = vector.broadcast %cst_39 : f32 to vector<16x128xf32>
    %145 = arith.mulf %144, %141 : vector<16x128xf32>
    %146 = arith.mulf %145, %141 : vector<16x128xf32>
    %147 = arith.mulf %146, %141 : vector<16x128xf32>
    %148 = arith.addf %141, %147 : vector<16x128xf32>
    %cst_40 = arith.constant 0.797884583 : f32
    %149 = vector.broadcast %cst_40 : f32 to vector<16x128xf32>
    %150 = arith.mulf %149, %148 : vector<16x128xf32>
    %151 = math.tanh %150 : vector<16x128xf32>
    %cst_41 = arith.constant 1.000000e+00 : f32
    %152 = vector.broadcast %cst_41 : f32 to vector<16x128xf32>
    %153 = arith.addf %152, %151 : vector<16x128xf32>
    %154 = arith.mulf %143, %153 : vector<16x128xf32>
    %155 = arith.truncf %154 : vector<16x128xf32> to vector<16x128xbf16>
    %c0_42 = arith.constant 0 : index
    %c0_43 = arith.constant 0 : index
    %156 = vector.load %arg5[%c0_42, %c0_43] : memref<128x32xbf16, #tpu.memory_space<vmem>>, vector<128x32xbf16>
    %cst_44 = arith.constant dense<0.000000e+00> : vector<16x32xf32>
    %157 = tpu.matmul %155, %156, %cst_44 {dimension_numbers = #tpu.dot_dimension_numbers<[1], [0], [0], [1], [0, 0, 1, 1], [], []>} : vector<16x128xbf16>, vector<128x32xbf16>, vector<16x32xf32> -> vector<16x32xf32>
    %158 = vector.extract_strided_slice %2 {offsets = [5, 0], sizes = [1, 32], strides = [1, 1]} : vector<8x128xf32> to vector<1x32xf32>
    %159 = vector.broadcast %158 : vector<1x32xf32> to vector<16x32xf32>
    %160 = arith.addf %157, %159 : vector<16x32xf32>
    %161 = arith.addf %110, %160 : vector<16x32xf32>
    %c0_45 = arith.constant 0 : index
    %c0_46 = arith.constant 0 : index
    %162 = vector.load %arg7[%c0_45, %c0_46] : memref<16x32xf32, #tpu.memory_space<vmem>>, vector<16x32xf32>
    tpu.vector_store %arg7[%c0_45, %c0_46], %161 {strides = array<i32>} : memref<16x32xf32, #tpu.memory_space<vmem>>, vector<16x32xf32>,
    return
  }
}

</mosaic_0001>

<llo_original>
// kernel: forward.1
$region0: #{forward.1}
  #allocation0 [shape = 'u32[]', space=smem, size = 0x4, offset = 0x4, fixed_abs, tag = 'smem constant byte address 0x4 - core index']
  #allocation1 [shape = 'u32[144,128]{1,0:T(1,128)}', space=vmem, size = 0x12000, scoped, tag = 'internal scratch']
  %s0 = inlined_call_operand.hbm [shape: f32[16,32], index: 0, kind: input, shape index: {}]
  %s1 = inlined_call_operand.hbm [shape: f32[16,16], index: 1, kind: input, shape index: {}]
  %s2 = inlined_call_operand.hbm [shape: bf16[32,128], index: 2, kind: input, shape index: {}]
  %s3 = inlined_call_operand.hbm [shape: bf16[4,8,32], index: 3, kind: input, shape index: {}]
  %s4 = inlined_call_operand.vmem [shape: bf16[32,128], index: 4, kind: input, shape index: {}]
  %s5 = inlined_call_operand.hbm [shape: bf16[128,32], index: 5, kind: input, shape index: {}]
  %s6 = inlined_call_operand.vmem [shape: f32[8,128], index: 6, kind: input, shape index: {}]
  %s7 = inlined_call_operand.hbm [shape: f32[16,32], index: 7, kind: output, shape index: {}]
  %s8 = sld [smem:[#allocation0]]
  $region58: #{forward.1} parent=0
    _
  %s10 = ssub.s32 1, %s8
  %s11 = scalar_select 0, %s10, %s8
  $region1: #{forward.1} parent=0
    #allocation2 [shape = 'u8[8192]{0}', space=vmem, size = 0x2000, scoped, tag = 'input window, operand 0, single buffered']
    #allocation3 [shape = 's32[1]{0}', space=sflag, size = 0x4, scoped, tag = 'scoped memory for forward.1']
    #allocation4 [shape = 's32[1]{0}', space=sflag, size = 0x4, scoped, tag = 'scoped memory for forward.1']
    #allocation5 [shape = 'u8[8192]{0}', space=vmem, size = 0x2000, scoped, tag = 'input window, operand 1, single buffered']
    #allocation6 [shape = 's32[1]{0}', space=sflag, size = 0x4, scoped, tag = 'scoped memory for forward.1']
    #allocation7 [shape = 'u8[8192]{0}', space=vmem, size = 0x2000, scoped, tag = 'input window, operand 2, single buffered']
    #allocation8 [shape = 'u8[8192]{0}', space=vmem, size = 0x2000, scoped, tag = 'input window, operand 3, single buffered']
    #allocation9 [shape = 's32[1]{0}', space=sflag, size = 0x4, scoped, tag = 'scoped memory for forward.1']
    #allocation10 [shape = 'u8[32768]{0}', space=vmem, size = 0x8000, scoped, tag = 'input window, operand 5, single buffered']
    #allocation11 [shape = 'u8[8192]{0}', space=vmem, size = 0x2000, scoped, tag = 'output window, operand 0, single buffered']
    %12 = vsyncpa [#allocation3], 0
    %13 = vsyncpa [#allocation6], 0
    %14 = vsyncpa [#allocation9], 0
    %15 = vsyncpa [#allocation4], 0
    // Predicated region
    $region2: #{forward.1} parent=1 // pred_check
      _
    $region3: #{forward.1} parent=1 // pred_check_branch
      %17 = sbr.rel (0) target = $region5
    $region4: #{forward.1} parent=1 // pred_region
      %s19 = ssub.s32 256, 256
      %20 = vsyncadd [#allocation3], %s19
      %s21 = sshll.u32 [#allocation2], 4
      %s22 = int_to_ptr.vmem [resolvable:$true] %s21
      %27 = dma.hbm_to_vmem [thread:$0]  %s0, 256, %s22, [#allocation3], 128, 128, 8
    $region5: #{forward.1} parent=1 // pred_fallthru
      _
    // Predicated region
    $region6: #{forward.1} parent=1 // pred_check
      _
    $region7: #{forward.1} parent=1 // pred_check_branch
      %29 = sbr.rel (0) target = $region9
    $region8: #{forward.1} parent=1 // pred_region
      %s31 = ssub.s32 256, 256
      %32 = vsyncadd [#allocation6], %s31
      %s33 = sshll.u32 [#allocation5], 4
      %s34 = int_to_ptr.vmem [resolvable:$true] %s33
      %39 = dma.hbm_to_vmem [thread:$0]  %s1, 256, %s34, [#allocation6], 128, 128, 8
    $region9: #{forward.1} parent=1 // pred_fallthru
      _
    // Predicated region
    $region10: #{forward.1} parent=1 // pred_check
      _
    $region11: #{forward.1} parent=1 // pred_check_branch
      %41 = sbr.rel (0) target = $region13
    $region12: #{forward.1} parent=1 // pred_region
      %s43 = ssub.s32 256, 256
      %44 = vsyncadd [#allocation6], %s43
      %s45 = sshll.u32 [#allocation7], 4
      %s46 = int_to_ptr.vmem [resolvable:$true] %s45
      %51 = dma.hbm_to_vmem [thread:$0]  %s2, 256, %s46, [#allocation6], 64, 64, 4
    $region13: #{forward.1} parent=1 // pred_fallthru
      _
    // Predicated region
    $region14: #{forward.1} parent=1 // pred_check
      _
    $region15: #{forward.1} parent=1 // pred_check_branch
      %53 = sbr.rel (0) target = $region17
    $region16: #{forward.1} parent=1 // pred_region
      %s55 = ssub.s32 256, 256
      %56 = vsyncadd [#allocation9], %s55
      %s57 = sshll.u32 [#allocation8], 4
      %s58 = int_to_ptr.vmem [resolvable:$true] %s57
      %63 = dma.hbm_to_vmem [thread:$0]  %s3, 256, %s58, [#allocation9], 64, 64, 4
    $region17: #{forward.1} parent=1 // pred_fallthru
      _
    // Predicated region
    $region18: #{forward.1} parent=1 // pred_check
      _
    $region19: #{forward.1} parent=1 // pred_check_branch
      %65 = sbr.rel (0) target = $region21
    $region20: #{forward.1} parent=1 // pred_region
      _
    $region21: #{forward.1} parent=1 // pred_fallthru
      _
    // Predicated region
    $region22: #{forward.1} parent=1 // pred_check
      _
    $region23: #{forward.1} parent=1 // pred_check_branch
      %67 = sbr.rel (0) target = $region25
    $region24: #{forward.1} parent=1 // pred_region
      %s69 = ssub.s32 1024, 1024
      %70 = vsyncadd [#allocation9], %s69
      %s71 = sshll.u32 [#allocation10], 4
      %s72 = int_to_ptr.vmem [resolvable:$true] %s71
      %77 = dma.hbm_to_vmem [thread:$0]  %s5, 1024, %s72, [#allocation9], 64, 64, 4
    $region25: #{forward.1} parent=1 // pred_fallthru
      _
    // Predicated region
    $region26: #{forward.1} parent=1 // pred_check
      _
    $region27: #{forward.1} parent=1 // pred_check_branch
      %79 = sbr.rel (0) target = $region29
    $region28: #{forward.1} parent=1 // pred_region
      _
    $region29: #{forward.1} parent=1 // pred_fallthru
      _
    // Predicated region
    $region30: #{forward.1} parent=1 // pred_check
      _
    $region31: #{forward.1} parent=1 // pred_check_branch
      %81 = sbr.rel (0) target = $region33
    $region32: #{forward.1} parent=1 // pred_region
      %82 = dma.done [#allocation3], 256
    $region33: #{forward.1} parent=1 // pred_fallthru
      _
    // Predicated region
    $region34: #{forward.1} parent=1 // pred_check
      _
    $region35: #{forward.1} parent=1 // pred_check_branch
      %84 = sbr.rel (0) target = $region37
    $region36: #{forward.1} parent=1 // pred_region
      %85 = dma.done [#allocation6], 256
    $region37: #{forward.1} parent=1 // pred_fallthru
      _
    // Predicated region
    $region38: #{forward.1} parent=1 // pred_check
      _
    $region39: #{forward.1} parent=1 // pred_check_branch
      %87 = sbr.rel (0) target = $region41
    $region40: #{forward.1} parent=1 // pred_region
      %88 = dma.done [#allocation6], 256
    $region41: #{forward.1} parent=1 // pred_fallthru
      _
    // Predicated region
    $region42: #{forward.1} parent=1 // pred_check
      _
    $region43: #{forward.1} parent=1 // pred_check_branch
      %90 = sbr.rel (0) target = $region45
    $region44: #{forward.1} parent=1 // pred_region
      %91 = dma.done [#allocation9], 256
    $region45: #{forward.1} parent=1 // pred_fallthru
      _
    // Predicated region
    $region46: #{forward.1} parent=1 // pred_check
      _
    $region47: #{forward.1} parent=1 // pred_check_branch
      %93 = sbr.rel (0) target = $region49
    $region48: #{forward.1} parent=1 // pred_region
      %94 = dma.done [#allocation9], 1024
    $region49: #{forward.1} parent=1 // pred_fallthru
      _
    %v96 = vld [vmem:[#allocation2] sm:$0xff]
    %v97 = vld [vmem:[#allocation2 + $0x8] sm:$0xff]
    %v98 = vld [vmem:[#allocation5] sm:$0xff]
    %v99 = vld [vmem:[#allocation5 + $0x8] sm:$0xff]
    %v100 = vld [vmem:[%s6] sm:$0xff]
    %vm101 = vcmask 261120
    %v102 = vsel %vm101, %v96, 0.0
    %103 = vadd.xlane.f32.xlu0 %v102
    %v104 = vpop.xlane.xlu0 %103
    %v105 = vsel %vm101, %v97, 0.0
    %106 = vadd.xlane.f32.xlu0 %v105
    %v107 = vpop.xlane.xlu0 %106
    %v108 = vrcp.pop 32.0
    %v109 = vmul.f32 %v104, %v108
    %v110 = vmul.f32 %v107, %v108
    %v111 = vsub.f32 %v96, %v109
    %v112 = vsub.f32 %v97, %v110
    %v113 = vmul.f32 %v111, %v111
    %v114 = vmul.f32 %v112, %v112
    %v115 = vsel %vm101, %v113, 0.0
    %116 = vadd.xlane.f32.xlu0 %v115
    %v117 = vpop.xlane.xlu0 %116
    %v118 = vsel %vm101, %v114, 0.0
    %119 = vadd.xlane.f32.xlu0 %v118
    %v120 = vpop.xlane.xlu0 %119
    %v121 = vrcp.pop 31.0
    %v122 = vmul.f32 %v117, %v121
    %v123 = vmul.f32 %v120, %v121
    %v124 = vrsqrt.pop %v122
    %v125 = vmul.f32 %v122, %v124
    %vm126 = vcmp.eq.f32.partialorder %v122, inf
    %v127 = vsel %vm126, %v122, %v125
    %vm128 = vcmp.eq.f32.partialorder %v122, 0.0
    %v129 = vand.u32 %v122, 2147483648
    %v130 = vsel %vm128, %v129, %v127
    %v131 = vrsqrt.pop %v123
    %v132 = vmul.f32 %v123, %v131
    %vm133 = vcmp.eq.f32.partialorder %v123, inf
    %v134 = vsel %vm133, %v123, %v132
    %vm135 = vcmp.eq.f32.partialorder %v123, 0.0
    %v136 = vand.u32 %v123, 2147483648
    %v137 = vsel %vm135, %v136, %v134
    %v138 = vadd.f32 %v130, 1e-06
    %v139 = vadd.f32 %v137, 1e-06
    %v140 = vrcp.pop %v138
    %v141 = vrcp.pop %v139
    %v142 = vlaneseq
    %v143 = vshrl.u32 %v142, 7
    %v144 = vsub.s32 2, %v143
    %v145 = vrot.slane %v100, %v144
    %v146 = vmul.f32 %v145, %v111
    %v147 = vmul.f32 %v145, %v112
    %v148 = vmul.f32 %v146, %v140
    %v149 = vmul.f32 %v147, %v141
    %v150 = vlaneseq
    %v151 = vshrl.u32 %v150, 7
    %v152 = vsub.s32 3, %v151
    %v153 = vrot.slane %v100, %v152
    %v154 = vadd.f32 %v148, %v153
    %v155 = vadd.f32 %v149, %v153
    %v156 = vpack.c.bf16 %v155, %v154
    %v157 = vld [vmem:[#allocation7] sm:$0xf]
    %v158 = vld [vmem:[#allocation7 + $0x4] sm:$0xf]
    %v159 = vld [vmem:[#allocation7 + $0x8] sm:$0xf]
    %v160 = vld [vmem:[#allocation7 + $0xc] sm:$0xf]
    %v161 = vlaneseq
    %v162 = vshrl.u32 %v161, 7
    %v163 = vsub.s32 0, %v162
    %v164 = vrot.slane %v100, %v163
    %v169 = vunpack.c.l.b16 %v157
    %v170 = vunpack.c.l.b16 %v158
    %v171 = vunpack.c.l.b16 %v159
    %v172 = vunpack.c.l.b16 %v160
    %v173 = vpack.c.b16 %v170, %v169
    %v174 = vpack.c.b16 %v172, %v171
    %v178 = vsel %vm101, %v156, 0
    %180 = vmatprep.subr.bf16.mxu0 0
    %181 = vmatpush1.bf16.msra.mxu0 %v173
    %182 = vmatprep.subr.bf16.mxu0 0
    %183 = vmatpush1.bf16.msra.mxu0 %v174
    %184 = vmatprep.subr.bf16.mxu0 0
    %185 = vmatpush1.bf16.msra.mxu0 0
    %186 = vmatprep.subr.bf16.mxu0 0
    %187 = vmatpush1.bf16.msra.mxu0 0
    %188 = vmatprep.subr.bf16.mxu0 0
    %189 = vmatpush1.bf16.msra.mxu0 0
    %190 = vmatprep.subr.bf16.mxu0 0
    %191 = vmatpush1.bf16.msra.mxu0 0
    %192 = vmatprep.subr.bf16.mxu0 0
    %193 = vmatpush1.bf16.msra.mxu0 0
    %194 = vmatprep.subr.bf16.mxu0 0
    %195 = vmatpush1.bf16.msra.mxu0 0
    %196 = vmatprep.subr.bf16.mxu0 0
    %197 = vmatpush1.bf16.msra.mxu0 0
    %198 = vmatprep.subr.bf16.mxu0 0
    %199 = vmatpush1.bf16.msra.mxu0 0
    %200 = vmatprep.subr.bf16.mxu0 0
    %201 = vmatpush1.bf16.msra.mxu0 0
    %202 = vmatprep.subr.bf16.mxu0 0
    %203 = vmatpush1.bf16.msra.mxu0 0
    %204 = vmatprep.subr.bf16.mxu0 0
    %205 = vmatpush1.bf16.msra.mxu0 0
    %206 = vmatprep.subr.bf16.mxu0 0
    %207 = vmatpush1.bf16.msra.mxu0 0
    %208 = vmatprep.subr.bf16.mxu0 0
    %209 = vmatpush1.bf16.msra.mxu0 0
    %210 = vmatprep.subr.bf16.mxu0 0
    %211 = vmatpush1.bf16.msra.mxu0 0
    %212 = vmatprep.mubr.bf16.mxu0 0
    %213 = vmatmul.mubr.bf16.gmra.mrb[0].mxu0 %v178
    %v214 = vpop.f32.mrb[0].mxu0
    %v215 = vadd.f32 %v164, %v214
    %v216 = vpop.f32.mrb[0].mxu0
    %v217 = vpop.f32.mrb[0].mxu0
    %v218 = vadd.f32 %v164, %v217
    %v219 = vpop.f32.mrb[0].mxu0
    %220 = vdwg.mxu0
    %v221 = vpack.c.bf16 %v218, %v215
    %223 = vrot.lane.b32.xlu0 %v221, 120
    %v224 = vpop.permute.xlu0 %223
    %225 = vrot.lane.b32.xlu0 %v221, 112
    %v226 = vpop.permute.xlu0 %225
    %227 = vrot.lane.b32.xlu0 %v221, 104
    %v228 = vpop.permute.xlu0 %227
    %229 = vrot.lane.b32.xlu0 %v221, 96
    %v230 = vpop.permute.xlu0 %229
    %vm231 = vcmask 64512
    %v233 = vsel %vm231, %v221, 0
    %v236 = vsel %vm231, %v230, 0
    %238 = vmatprep.subr.bf16.mxu0 0
    %239 = vmatpush1.bf16.xpose.msra.mxu0 %v236
    %240 = vmatprep.subr.bf16.mxu0 0
    %241 = vmatpush1.bf16.xpose.msra.mxu0 0
    %242 = vmatprep.subr.bf16.mxu0 0
    %243 = vmatpush1.bf16.xpose.msra.mxu0 0
    %244 = vmatprep.subr.bf16.mxu0 0
    %245 = vmatpush1.bf16.xpose.msra.mxu0 0
    %246 = vmatprep.subr.bf16.mxu0 0
    %247 = vmatpush1.bf16.xpose.msra.mxu0 0
    %248 = vmatprep.subr.bf16.mxu0 0
    %249 = vmatpush1.bf16.xpose.msra.mxu0 0
    %250 = vmatprep.subr.bf16.mxu0 0
    %251 = vmatpush1.bf16.xpose.msra.mxu0 0
    %252 = vmatprep.subr.bf16.mxu0 0
    %253 = vmatpush1.bf16.xpose.msra.mxu0 0
    %254 = vmatprep.subr.bf16.mxu0 0
    %255 = vmatpush1.bf16.xpose.msra.mxu0 0
    %256 = vmatprep.subr.bf16.mxu0 0
    %257 = vmatpush1.bf16.xpose.msra.mxu0 0
    %258 = vmatprep.subr.bf16.mxu0 0
    %259 = vmatpush1.bf16.xpose.msra.mxu0 0
    %260 = vmatprep.subr.bf16.mxu0 0
    %261 = vmatpush1.bf16.xpose.msra.mxu0 0
    %262 = vmatprep.subr.bf16.mxu0 0
    %263 = vmatpush1.bf16.xpose.msra.mxu0 0
    %264 = vmatprep.subr.bf16.mxu0 0
    %265 = vmatpush1.bf16.xpose.msra.mxu0 0
    %266 = vmatprep.subr.bf16.mxu0 0
    %267 = vmatpush1.bf16.xpose.msra.mxu0 0
    %268 = vmatprep.subr.bf16.mxu0 0
    %269 = vmatpush1.bf16.xpose.msra.mxu0 0
    %270 = vmatprep.mubr.bf16.mxu0 0
    %271 = vmatmul.mubr.bf16.gmra.mrb[0].mxu0 %v233
    %v272 = vpop.f32.mrb[0].mxu0
    %v273 = vadd.f32 %v98, %v272
    %v274 = vpop.f32.mrb[0].mxu0
    %v275 = vpop.f32.mrb[0].mxu0
    %v276 = vadd.f32 %v99, %v275
    %v277 = vpop.f32.mrb[0].mxu0
    %278 = vdwg.mxu0
    %279 = vrot.lane.b32.xlu0 %v224, 96
    %v280 = vpop.permute.xlu0 %279
    %v282 = vsel %vm231, %v224, 0
    %v285 = vsel %vm231, %v280, 0
    %287 = vmatprep.subr.bf16.mxu0 0
    %288 = vmatpush1.bf16.xpose.msra.mxu0 %v285
    %289 = vmatprep.subr.bf16.mxu0 0
    %290 = vmatpush1.bf16.xpose.msra.mxu0 0
    %291 = vmatprep.subr.bf16.mxu0 0
    %292 = vmatpush1.bf16.xpose.msra.mxu0 0
    %293 = vmatprep.subr.bf16.mxu0 0
    %294 = vmatpush1.bf16.xpose.msra.mxu0 0
    %295 = vmatprep.subr.bf16.mxu0 0
    %296 = vmatpush1.bf16.xpose.msra.mxu0 0
    %297 = vmatprep.subr.bf16.mxu0 0
    %298 = vmatpush1.bf16.xpose.msra.mxu0 0
    %299 = vmatprep.subr.bf16.mxu0 0
    %300 = vmatpush1.bf16.xpose.msra.mxu0 0
    %301 = vmatprep.subr.bf16.mxu0 0
    %302 = vmatpush1.bf16.xpose.msra.mxu0 0
    %303 = vmatprep.subr.bf16.mxu0 0
    %304 = vmatpush1.bf16.xpose.msra.mxu0 0
    %305 = vmatprep.subr.bf16.mxu0 0
    %306 = vmatpush1.bf16.xpose.msra.mxu0 0
    %307 = vmatprep.subr.bf16.mxu0 0
    %308 = vmatpush1.bf16.xpose.msra.mxu0 0
    %309 = vmatprep.subr.bf16.mxu0 0
    %310 = vmatpush1.bf16.xpose.msra.mxu0 0
    %311 = vmatprep.subr.bf16.mxu0 0
    %312 = vmatpush1.bf16.xpose.msra.mxu0 0
    %313 = vmatprep.subr.bf16.mxu0 0
    %314 = vmatpush1.bf16.xpose.msra.mxu0 0
    %315 = vmatprep.subr.bf16.mxu0 0
    %316 = vmatpush1.bf16.xpose.msra.mxu0 0
    %317 = vmatprep.subr.bf16.mxu0 0
    %318 = vmatpush1.bf16.xpose.msra.mxu0 0
    %319 = vmatprep.mubr.bf16.mxu0 0
    %320 = vmatmul.mubr.bf16.gmra.mrb[0].mxu0 %v282
    %v321 = vpop.f32.mrb[0].mxu0
    %v322 = vadd.f32 %v98, %v321
    %v323 = vpop.f32.mrb[0].mxu0
    %v324 = vpop.f32.mrb[0].mxu0
    %v325 = vadd.f32 %v99, %v324
    %v326 = vpop.f32.mrb[0].mxu0
    %327 = vdwg.mxu0
    %328 = vrot.lane.b32.xlu0 %v226, 96
    %v329 = vpop.permute.xlu0 %328
    %v331 = vsel %vm231, %v226, 0
    %v334 = vsel %vm231, %v329, 0
    %336 = vmatprep.subr.bf16.mxu0 0
    %337 = vmatpush1.bf16.xpose.msra.mxu0 %v334
    %338 = vmatprep.subr.bf16.mxu0 0
    %339 = vmatpush1.bf16.xpose.msra.mxu0 0
    %340 = vmatprep.subr.bf16.mxu0 0
    %341 = vmatpush1.bf16.xpose.msra.mxu0 0
    %342 = vmatprep.subr.bf16.mxu0 0
    %343 = vmatpush1.bf16.xpose.msra.mxu0 0
    %344 = vmatprep.subr.bf16.mxu0 0
    %345 = vmatpush1.bf16.xpose.msra.mxu0 0
    %346 = vmatprep.subr.bf16.mxu0 0
    %347 = vmatpush1.bf16.xpose.msra.mxu0 0
    %348 = vmatprep.subr.bf16.mxu0 0
    %349 = vmatpush1.bf16.xpose.msra.mxu0 0
    %350 = vmatprep.subr.bf16.mxu0 0
    %351 = vmatpush1.bf16.xpose.msra.mxu0 0
    %352 = vmatprep.subr.bf16.mxu0 0
    %353 = vmatpush1.bf16.xpose.msra.mxu0 0
    %354 = vmatprep.subr.bf16.mxu0 0
    %355 = vmatpush1.bf16.xpose.msra.mxu0 0
    %356 = vmatprep.subr.bf16.mxu0 0
    %357 = vmatpush1.bf16.xpose.msra.mxu0 0
    %358 = vmatprep.subr.bf16.mxu0 0
    %359 = vmatpush1.bf16.xpose.msra.mxu0 0
    %360 = vmatprep.subr.bf16.mxu0 0
    %361 = vmatpush1.bf16.xpose.msra.mxu0 0
    %362 = vmatprep.subr.bf16.mxu0 0
    %363 = vmatpush1.bf16.xpose.msra.mxu0 0
    %364 = vmatprep.subr.bf16.mxu0 0
    %365 = vmatpush1.bf16.xpose.msra.mxu0 0
    %366 = vmatprep.subr.bf16.mxu0 0
    %367 = vmatpush1.bf16.xpose.msra.mxu0 0
    %368 = vmatprep.mubr.bf16.mxu0 0
    %369 = vmatmul.mubr.bf16.gmra.mrb[0].mxu0 %v331
    %v370 = vpop.f32.mrb[0].mxu0
    %v371 = vadd.f32 %v98, %v370
    %v372 = vpop.f32.mrb[0].mxu0
    %v373 = vpop.f32.mrb[0].mxu0
    %v374 = vadd.f32 %v99, %v373
    %v375 = vpop.f32.mrb[0].mxu0
    %376 = vdwg.mxu0
    %377 = vrot.lane.b32.xlu0 %v228, 96
    %v378 = vpop.permute.xlu0 %377
    %v380 = vsel %vm231, %v228, 0
    %v383 = vsel %vm231, %v378, 0
    %385 = vmatprep.subr.bf16.mxu0 0
    %386 = vmatpush1.bf16.xpose.msra.mxu0 %v383
    %387 = vmatprep.subr.bf16.mxu0 0
    %388 = vmatpush1.bf16.xpose.msra.mxu0 0
    %389 = vmatprep.subr.bf16.mxu0 0
    %390 = vmatpush1.bf16.xpose.msra.mxu0 0
    %391 = vmatprep.subr.bf16.mxu0 0
    %392 = vmatpush1.bf16.xpose.msra.mxu0 0
    %393 = vmatprep.subr.bf16.mxu0 0
    %394 = vmatpush1.bf16.xpose.msra.mxu0 0
    %395 = vmatprep.subr.bf16.mxu0 0
    %396 = vmatpush1.bf16.xpose.msra.mxu0 0
    %397 = vmatprep.subr.bf16.mxu0 0
    %398 = vmatpush1.bf16.xpose.msra.mxu0 0
    %399 = vmatprep.subr.bf16.mxu0 0
    %400 = vmatpush1.bf16.xpose.msra.mxu0 0
    %401 = vmatprep.subr.bf16.mxu0 0
    %402 = vmatpush1.bf16.xpose.msra.mxu0 0
    %403 = vmatprep.subr.bf16.mxu0 0
    %404 = vmatpush1.bf16.xpose.msra.mxu0 0
    %405 = vmatprep.subr.bf16.mxu0 0
    %406 = vmatpush1.bf16.xpose.msra.mxu0 0
    %407 = vmatprep.subr.bf16.mxu0 0
    %408 = vmatpush1.bf16.xpose.msra.mxu0 0
    %409 = vmatprep.subr.bf16.mxu0 0
    %410 = vmatpush1.bf16.xpose.msra.mxu0 0
    %411 = vmatprep.subr.bf16.mxu0 0
    %412 = vmatpush1.bf16.xpose.msra.mxu0 0
    %413 = vmatprep.subr.bf16.mxu0 0
    %414 = vmatpush1.bf16.xpose.msra.mxu0 0
    %415 = vmatprep.subr.bf16.mxu0 0
    %416 = vmatpush1.bf16.xpose.msra.mxu0 0
    %417 = vmatprep.mubr.bf16.mxu0 0
    %418 = vmatmul.mubr.bf16.gmra.mrb[0].mxu0 %v380
    %v419 = vpop.f32.mrb[0].mxu0
    %v420 = vadd.f32 %v98, %v419
    %v421 = vpop.f32.mrb[0].mxu0
    %v422 = vpop.f32.mrb[0].mxu0
    %v423 = vadd.f32 %v99, %v422
    %v424 = vpop.f32.mrb[0].mxu0
    %425 = vdwg.mxu0
    %vm426 = vcmask 130048
    %v427 = vsel %vm426, %v273, -inf
    %428 = vmax.xlane.f32.xlu0 %v427
    %v429 = vpop.xlane.xlu0 %428
    %v430 = vsel %vm426, %v276, -inf
    %431 = vmax.xlane.f32.xlu0 %v430
    %v432 = vpop.xlane.xlu0 %431
    %v433 = vsel %vm426, %v322, -inf
    %434 = vmax.xlane.f32.xlu0 %v433
    %v435 = vpop.xlane.xlu0 %434
    %v436 = vsel %vm426, %v325, -inf
    %437 = vmax.xlane.f32.xlu0 %v436
    %v438 = vpop.xlane.xlu0 %437
    %v439 = vsel %vm426, %v371, -inf
    %440 = vmax.xlane.f32.xlu0 %v439
    %v441 = vpop.xlane.xlu0 %440
    %v442 = vsel %vm426, %v374, -inf
    %443 = vmax.xlane.f32.xlu0 %v442
    %v444 = vpop.xlane.xlu0 %443
    %v445 = vsel %vm426, %v420, -inf
    %446 = vmax.xlane.f32.xlu0 %v445
    %v447 = vpop.xlane.xlu0 %446
    %v448 = vsel %vm426, %v423, -inf
    %449 = vmax.xlane.f32.xlu0 %v448
    %v450 = vpop.xlane.xlu0 %449
    %v451 = vsub.f32 %v273, %v429
    %v452 = vsub.f32 %v276, %v432
    %v453 = vsub.f32 %v322, %v435
    %v454 = vsub.f32 %v325, %v438
    %v455 = vsub.f32 %v371, %v441
    %v456 = vsub.f32 %v374, %v444
    %v457 = vsub.f32 %v420, %v447
    %v458 = vsub.f32 %v423, %v450
    %v459 = vmul.f32 %v451, 1.442695
    %v460 = vpow.pop %v459
    %v461 = vmul.f32 %v452, 1.442695
    %v462 = vpow.pop %v461
    %v463 = vmul.f32 %v453, 1.442695
    %v464 = vpow.pop %v463
    %v465 = vmul.f32 %v454, 1.442695
    %v466 = vpow.pop %v465
    %v467 = vmul.f32 %v455, 1.442695
    %v468 = vpow.pop %v467
    %v469 = vmul.f32 %v456, 1.442695
    %v470 = vpow.pop %v469
    %v471 = vmul.f32 %v457, 1.442695
    %v472 = vpow.pop %v471
    %v473 = vmul.f32 %v458, 1.442695
    %v474 = vpow.pop %v473
    %v475 = vsel %vm426, %v460, 0.0
    %476 = vadd.xlane.f32.xlu0 %v475
    %v477 = vpop.xlane.xlu0 %476
    %v478 = vsel %vm426, %v462, 0.0
    %479 = vadd.xlane.f32.xlu0 %v478
    %v480 = vpop.xlane.xlu0 %479
    %v481 = vsel %vm426, %v464, 0.0
    %482 = vadd.xlane.f32.xlu0 %v481
    %v483 = vpop.xlane.xlu0 %482
    %v484 = vsel %vm426, %v466, 0.0
    %485 = vadd.xlane.f32.xlu0 %v484
    %v486 = vpop.xlane.xlu0 %485
    %v487 = vsel %vm426, %v468, 0.0
    %488 = vadd.xlane.f32.xlu0 %v487
    %v489 = vpop.xlane.xlu0 %488
    %v490 = vsel %vm426, %v470, 0.0
    %491 = vadd.xlane.f32.xlu0 %v490
    %v492 = vpop.xlane.xlu0 %491
    %v493 = vsel %vm426, %v472, 0.0
    %494 = vadd.xlane.f32.xlu0 %v493
    %v495 = vpop.xlane.xlu0 %494
    %v496 = vsel %vm426, %v474, 0.0
    %497 = vadd.xlane.f32.xlu0 %v496
    %v498 = vpop.xlane.xlu0 %497
    %v499 = vrcp.pop %v477
    %v500 = vrcp.pop %v480
    %v501 = vrcp.pop %v483
    %v502 = vrcp.pop %v486
    %v503 = vrcp.pop %v489
    %v504 = vrcp.pop %v492
    %v505 = vrcp.pop %v495
    %v506 = vrcp.pop %v498
    %v507 = vmul.f32 %v460, %v499
    %v508 = vmul.f32 %v462, %v500
    %v509 = vmul.f32 %v464, %v501
    %v510 = vmul.f32 %v466, %v502
    %v511 = vmul.f32 %v468, %v503
    %v512 = vmul.f32 %v470, %v504
    %v513 = vmul.f32 %v472, %v505
    %v514 = vmul.f32 %v474, %v506
    %v515 = vpack.c.bf16 %v508, %v507
    %v516 = vpack.c.bf16 %v510, %v509
    %v517 = vpack.c.bf16 %v512, %v511
    %v518 = vpack.c.bf16 %v514, %v513
    %519 = vrot.lane.b32.xlu0 %v221, 64
    %v520 = vpop.permute.xlu0 %519
    %v523 = vsel %vm426, %v515, 0
    %525 = vmatprep.subr.bf16.mxu0 0
    %526 = vmatpush1.bf16.msra.mxu0 %v520
    %527 = vmatprep.subr.bf16.mxu0 0
    %528 = vmatpush1.bf16.msra.mxu0 0
    %529 = vmatprep.subr.bf16.mxu0 0
    %530 = vmatpush1.bf16.msra.mxu0 0
    %531 = vmatprep.subr.bf16.mxu0 0
    %532 = vmatpush1.bf16.msra.mxu0 0
    %533 = vmatprep.subr.bf16.mxu0 0
    %534 = vmatpush1.bf16.msra.mxu0 0
    %535 = vmatprep.subr.bf16.mxu0 0
    %536 = vmatpush1.bf16.msra.mxu0 0
    %537 = vmatprep.subr.bf16.mxu0 0
    %538 = vmatpush1.bf16.msra.mxu0 0
    %539 = vmatprep.subr.bf16.mxu0 0
    %540 = vmatpush1.bf16.msra.mxu0 0
    %541 = vmatprep.subr.bf16.mxu0 0
    %542 = vmatpush1.bf16.msra.mxu0 0
    %543 = vmatprep.subr.bf16.mxu0 0
    %544 = vmatpush1.bf16.msra.mxu0 0
    %545 = vmatprep.subr.bf16.mxu0 0
    %546 = vmatpush1.bf16.msra.mxu0 0
    %547 = vmatprep.subr.bf16.mxu0 0
    %548 = vmatpush1.bf16.msra.mxu0 0
    %549 = vmatprep.subr.bf16.mxu0 0
    %550 = vmatpush1.bf16.msra.mxu0 0
    %551 = vmatprep.subr.bf16.mxu0 0
    %552 = vmatpush1.bf16.msra.mxu0 0
    %553 = vmatprep.subr.bf16.mxu0 0
    %554 = vmatpush1.bf16.msra.mxu0 0
    %555 = vmatprep.subr.bf16.mxu0 0
    %556 = vmatpush1.bf16.msra.mxu0 0
    %557 = vmatprep.mubr.bf16.mxu0 0
    %558 = vmatmul.mubr.bf16.gmra.mrb[0].mxu0 %v523
    %v559 = vpop.f32.mrb[0].mxu0
    %v560 = vadd.f32 0.0, %v559
    %v561 = vpop.f32.mrb[0].mxu0
    %v562 = vpop.f32.mrb[0].mxu0
    %v563 = vadd.f32 0.0, %v562
    %v564 = vpop.f32.mrb[0].mxu0
    %565 = vdwg.mxu0
    %566 = vrot.lane.b32.xlu0 %v224, 64
    %v567 = vpop.permute.xlu0 %566
    %v570 = vsel %vm426, %v516, 0
    %572 = vmatprep.subr.bf16.mxu0 0
    %573 = vmatpush1.bf16.msra.mxu0 %v567
    %574 = vmatprep.subr.bf16.mxu0 0
    %575 = vmatpush1.bf16.msra.mxu0 0
    %576 = vmatprep.subr.bf16.mxu0 0
    %577 = vmatpush1.bf16.msra.mxu0 0
    %578 = vmatprep.subr.bf16.mxu0 0
    %579 = vmatpush1.bf16.msra.mxu0 0
    %580 = vmatprep.subr.bf16.mxu0 0
    %581 = vmatpush1.bf16.msra.mxu0 0
    %582 = vmatprep.subr.bf16.mxu0 0
    %583 = vmatpush1.bf16.msra.mxu0 0
    %584 = vmatprep.subr.bf16.mxu0 0
    %585 = vmatpush1.bf16.msra.mxu0 0
    %586 = vmatprep.subr.bf16.mxu0 0
    %587 = vmatpush1.bf16.msra.mxu0 0
    %588 = vmatprep.subr.bf16.mxu0 0
    %589 = vmatpush1.bf16.msra.mxu0 0
    %590 = vmatprep.subr.bf16.mxu0 0
    %591 = vmatpush1.bf16.msra.mxu0 0
    %592 = vmatprep.subr.bf16.mxu0 0
    %593 = vmatpush1.bf16.msra.mxu0 0
    %594 = vmatprep.subr.bf16.mxu0 0
    %595 = vmatpush1.bf16.msra.mxu0 0
    %596 = vmatprep.subr.bf16.mxu0 0
    %597 = vmatpush1.bf16.msra.mxu0 0
    %598 = vmatprep.subr.bf16.mxu0 0
    %599 = vmatpush1.bf16.msra.mxu0 0
    %600 = vmatprep.subr.bf16.mxu0 0
    %601 = vmatpush1.bf16.msra.mxu0 0
    %602 = vmatprep.subr.bf16.mxu0 0
    %603 = vmatpush1.bf16.msra.mxu0 0
    %604 = vmatprep.mubr.bf16.mxu0 0
    %605 = vmatmul.mubr.bf16.gmra.mrb[0].mxu0 %v570
    %v606 = vpop.f32.mrb[0].mxu0
    %v607 = vadd.f32 0.0, %v606
    %v608 = vpop.f32.mrb[0].mxu0
    %v609 = vpop.f32.mrb[0].mxu0
    %v610 = vadd.f32 0.0, %v609
    %v611 = vpop.f32.mrb[0].mxu0
    %612 = vdwg.mxu0
    %613 = vrot.lane.b32.xlu0 %v226, 64
    %v614 = vpop.permute.xlu0 %613
    %v617 = vsel %vm426, %v517, 0
    %619 = vmatprep.subr.bf16.mxu0 0
    %620 = vmatpush1.bf16.msra.mxu0 %v614
    %621 = vmatprep.subr.bf16.mxu0 0
    %622 = vmatpush1.bf16.msra.mxu0 0
    %623 = vmatprep.subr.bf16.mxu0 0
    %624 = vmatpush1.bf16.msra.mxu0 0
    %625 = vmatprep.subr.bf16.mxu0 0
    %626 = vmatpush1.bf16.msra.mxu0 0
    %627 = vmatprep.subr.bf16.mxu0 0
    %628 = vmatpush1.bf16.msra.mxu0 0
    %629 = vmatprep.subr.bf16.mxu0 0
    %630 = vmatpush1.bf16.msra.mxu0 0
    %631 = vmatprep.subr.bf16.mxu0 0
    %632 = vmatpush1.bf16.msra.mxu0 0
    %633 = vmatprep.subr.bf16.mxu0 0
    %634 = vmatpush1.bf16.msra.mxu0 0
    %635 = vmatprep.subr.bf16.mxu0 0
    %636 = vmatpush1.bf16.msra.mxu0 0
    %637 = vmatprep.subr.bf16.mxu0 0
    %638 = vmatpush1.bf16.msra.mxu0 0
    %639 = vmatprep.subr.bf16.mxu0 0
    %640 = vmatpush1.bf16.msra.mxu0 0
    %641 = vmatprep.subr.bf16.mxu0 0
    %642 = vmatpush1.bf16.msra.mxu0 0
    %643 = vmatprep.subr.bf16.mxu0 0
    %644 = vmatpush1.bf16.msra.mxu0 0
    %645 = vmatprep.subr.bf16.mxu0 0
    %646 = vmatpush1.bf16.msra.mxu0 0
    %647 = vmatprep.subr.bf16.mxu0 0
    %648 = vmatpush1.bf16.msra.mxu0 0
    %649 = vmatprep.subr.bf16.mxu0 0
    %650 = vmatpush1.bf16.msra.mxu0 0
    %651 = vmatprep.mubr.bf16.mxu0 0
    %652 = vmatmul.mubr.bf16.gmra.mrb[0].mxu0 %v617
    %v653 = vpop.f32.mrb[0].mxu0
    %v654 = vadd.f32 0.0, %v653
    %v655 = vpop.f32.mrb[0].mxu0
    %v656 = vpop.f32.mrb[0].mxu0
    %v657 = vadd.f32 0.0, %v656
    %v658 = vpop.f32.mrb[0].mxu0
    %659 = vdwg.mxu0
    %660 = vrot.lane.b32.xlu0 %v228, 64
    %v661 = vpop.permute.xlu0 %660
    %v664 = vsel %vm426, %v518, 0
    %666 = vmatprep.subr.bf16.mxu0 0
    %667 = vmatpush1.bf16.msra.mxu0 %v661
    %668 = vmatprep.subr.bf16.mxu0 0
    %669 = vmatpush1.bf16.msra.mxu0 0
    %670 = vmatprep.subr.bf16.mxu0 0
    %671 = vmatpush1.bf16.msra.mxu0 0
    %672 = vmatprep.subr.bf16.mxu0 0
    %673 = vmatpush1.bf16.msra.mxu0 0
    %674 = vmatprep.subr.bf16.mxu0 0
    %675 = vmatpush1.bf16.msra.mxu0 0
    %676 = vmatprep.subr.bf16.mxu0 0
    %677 = vmatpush1.bf16.msra.mxu0 0
    %678 = vmatprep.subr.bf16.mxu0 0
    %679 = vmatpush1.bf16.msra.mxu0 0
    %680 = vmatprep.subr.bf16.mxu0 0
    %681 = vmatpush1.bf16.msra.mxu0 0
    %682 = vmatprep.subr.bf16.mxu0 0
    %683 = vmatpush1.bf16.msra.mxu0 0
    %684 = vmatprep.subr.bf16.mxu0 0
    %685 = vmatpush1.bf16.msra.mxu0 0
    %686 = vmatprep.subr.bf16.mxu0 0
    %687 = vmatpush1.bf16.msra.mxu0 0
    %688 = vmatprep.subr.bf16.mxu0 0
    %689 = vmatpush1.bf16.msra.mxu0 0
    %690 = vmatprep.subr.bf16.mxu0 0
    %691 = vmatpush1.bf16.msra.mxu0 0
    %692 = vmatprep.subr.bf16.mxu0 0
    %693 = vmatpush1.bf16.msra.mxu0 0
    %694 = vmatprep.subr.bf16.mxu0 0
    %695 = vmatpush1.bf16.msra.mxu0 0
    %696 = vmatprep.subr.bf16.mxu0 0
    %697 = vmatpush1.bf16.msra.mxu0 0
    %698 = vmatprep.mubr.bf16.mxu0 0
    %699 = vmatmul.mubr.bf16.gmra.mrb[0].mxu0 %v664
    %v700 = vpop.f32.mrb[0].mxu0
    %v701 = vadd.f32 0.0, %v700
    %v702 = vpop.f32.mrb[0].mxu0
    %v703 = vpop.f32.mrb[0].mxu0
    %v704 = vadd.f32 0.0, %v703
    %v705 = vpop.f32.mrb[0].mxu0
    %706 = vdwg.mxu0
    %v707 = vpack.c.bf16 %v563, %v560
    %v708 = vld [vmem:[#allocation8] sm:$0xf]
    %v709 = vpack.c.bf16 %v610, %v607
    %s710 = scalar_lea.vmem [#allocation8], 4
    %v711 = vld [vmem:[%s710] sm:$0xf]
    %v713 = vsel %vm231, %v709, 0
    %vm715 = vcmask 1043456
    %v717 = vsel %vm715, %v711, 0
    %719 = vmatprep.subr.bf16.mxu0 0
    %720 = vmatpush1.bf16.msra.mxu0 %v717
    %721 = vmatprep.subr.bf16.mxu0 0
    %722 = vmatpush1.bf16.msra.mxu0 0
    %723 = vmatprep.subr.bf16.mxu0 0
    %724 = vmatpush1.bf16.msra.mxu0 0
    %725 = vmatprep.subr.bf16.mxu0 0
    %726 = vmatpush1.bf16.msra.mxu0 0
    %727 = vmatprep.subr.bf16.mxu0 0
    %728 = vmatpush1.bf16.msra.mxu0 0
    %729 = vmatprep.subr.bf16.mxu0 0
    %730 = vmatpush1.bf16.msra.mxu0 0
    %731 = vmatprep.subr.bf16.mxu0 0
    %732 = vmatpush1.bf16.msra.mxu0 0
    %733 = vmatprep.subr.bf16.mxu0 0
    %734 = vmatpush1.bf16.msra.mxu0 0
    %735 = vmatprep.subr.bf16.mxu0 0
    %736 = vmatpush1.bf16.msra.mxu0 0
    %737 = vmatprep.subr.bf16.mxu0 0
    %738 = vmatpush1.bf16.msra.mxu0 0
    %739 = vmatprep.subr.bf16.mxu0 0
    %740 = vmatpush1.bf16.msra.mxu0 0
    %741 = vmatprep.subr.bf16.mxu0 0
    %742 = vmatpush1.bf16.msra.mxu0 0
    %743 = vmatprep.subr.bf16.mxu0 0
    %744 = vmatpush1.bf16.msra.mxu0 0
    %745 = vmatprep.subr.bf16.mxu0 0
    %746 = vmatpush1.bf16.msra.mxu0 0
    %747 = vmatprep.subr.bf16.mxu0 0
    %748 = vmatpush1.bf16.msra.mxu0 0
    %749 = vmatprep.subr.bf16.mxu0 0
    %750 = vmatpush1.bf16.msra.mxu0 0
    %751 = vmatprep.mubr.bf16.mxu0 0
    %752 = vmatmul.mubr.bf16.gmra.mrb[0].mxu0 %v713
    %v753 = vpop.f32.mrb[0].mxu0
    %v754 = vadd.f32 0.0, %v753
    %v755 = vpop.f32.mrb[0].mxu0
    %v756 = vpop.f32.mrb[0].mxu0
    %v757 = vadd.f32 0.0, %v756
    %v758 = vpop.f32.mrb[0].mxu0
    %759 = vdwg.mxu0
    %v761 = vsel %vm231, %v707, 0
    %v764 = vsel %vm715, %v708, 0
    %766 = vmatprep.subr.bf16.mxu0 0
    %767 = vmatpush1.bf16.msra.mxu0 %v764
    %768 = vmatprep.subr.bf16.mxu0 0
    %769 = vmatpush1.bf16.msra.mxu0 0
    %770 = vmatprep.subr.bf16.mxu0 0
    %771 = vmatpush1.bf16.msra.mxu0 0
    %772 = vmatprep.subr.bf16.mxu0 0
    %773 = vmatpush1.bf16.msra.mxu0 0
    %774 = vmatprep.subr.bf16.mxu0 0
    %775 = vmatpush1.bf16.msra.mxu0 0
    %776 = vmatprep.subr.bf16.mxu0 0
    %777 = vmatpush1.bf16.msra.mxu0 0
    %778 = vmatprep.subr.bf16.mxu0 0
    %779 = vmatpush1.bf16.msra.mxu0 0
    %780 = vmatprep.subr.bf16.mxu0 0
    %781 = vmatpush1.bf16.msra.mxu0 0
    %782 = vmatprep.subr.bf16.mxu0 0
    %783 = vmatpush1.bf16.msra.mxu0 0
    %784 = vmatprep.subr.bf16.mxu0 0
    %785 = vmatpush1.bf16.msra.mxu0 0
    %786 = vmatprep.subr.bf16.mxu0 0
    %787 = vmatpush1.bf16.msra.mxu0 0
    %788 = vmatprep.subr.bf16.mxu0 0
    %789 = vmatpush1.bf16.msra.mxu0 0
    %790 = vmatprep.subr.bf16.mxu0 0
    %791 = vmatpush1.bf16.msra.mxu0 0
    %792 = vmatprep.subr.bf16.mxu0 0
    %793 = vmatpush1.bf16.msra.mxu0 0
    %794 = vmatprep.subr.bf16.mxu0 0
    %795 = vmatpush1.bf16.msra.mxu0 0
    %796 = vmatprep.subr.bf16.mxu0 0
    %797 = vmatpush1.bf16.msra.mxu0 0
    %798 = vmatprep.mubr.bf16.mxu0 0
    %799 = vmatmul.mubr.bf16.gmra.mrb[0].mxu0 %v761
    %v800 = vpop.f32.mrb[0].mxu0
    %v801 = vadd.f32 %v754, %v800
    %v802 = vpop.f32.mrb[0].mxu0
    %v803 = vpop.f32.mrb[0].mxu0
    %v804 = vadd.f32 %v757, %v803
    %v805 = vpop.f32.mrb[0].mxu0
    %806 = vdwg.mxu0
    %v807 = vpack.c.bf16 %v657, %v654
    %s808 = scalar_lea.vmem [#allocation8], 8
    %v809 = vld [vmem:[%s808] sm:$0xf]
    %v811 = vsel %vm231, %v807, 0
    %v814 = vsel %vm715, %v809, 0
    %816 = vmatprep.subr.bf16.mxu0 0
    %817 = vmatpush1.bf16.msra.mxu0 %v814
    %818 = vmatprep.subr.bf16.mxu0 0
    %819 = vmatpush1.bf16.msra.mxu0 0
    %820 = vmatprep.subr.bf16.mxu0 0
    %821 = vmatpush1.bf16.msra.mxu0 0
    %822 = vmatprep.subr.bf16.mxu0 0
    %823 = vmatpush1.bf16.msra.mxu0 0
    %824 = vmatprep.subr.bf16.mxu0 0
    %825 = vmatpush1.bf16.msra.mxu0 0
    %826 = vmatprep.subr.bf16.mxu0 0
    %827 = vmatpush1.bf16.msra.mxu0 0
    %828 = vmatprep.subr.bf16.mxu0 0
    %829 = vmatpush1.bf16.msra.mxu0 0
    %830 = vmatprep.subr.bf16.mxu0 0
    %831 = vmatpush1.bf16.msra.mxu0 0
    %832 = vmatprep.subr.bf16.mxu0 0
    %833 = vmatpush1.bf16.msra.mxu0 0
    %834 = vmatprep.subr.bf16.mxu0 0
    %835 = vmatpush1.bf16.msra.mxu0 0
    %836 = vmatprep.subr.bf16.mxu0 0
    %837 = vmatpush1.bf16.msra.mxu0 0
    %838 = vmatprep.subr.bf16.mxu0 0
    %839 = vmatpush1.bf16.msra.mxu0 0
    %840 = vmatprep.subr.bf16.mxu0 0
    %841 = vmatpush1.bf16.msra.mxu0 0
    %842 = vmatprep.subr.bf16.mxu0 0
    %843 = vmatpush1.bf16.msra.mxu0 0
    %844 = vmatprep.subr.bf16.mxu0 0
    %845 = vmatpush1.bf16.msra.mxu0 0
    %846 = vmatprep.subr.bf16.mxu0 0
    %847 = vmatpush1.bf16.msra.mxu0 0
    %848 = vmatprep.mubr.bf16.mxu0 0
    %849 = vmatmul.mubr.bf16.gmra.mrb[0].mxu0 %v811
    %v850 = vpop.f32.mrb[0].mxu0
    %v851 = vadd.f32 0.0, %v850
    %v852 = vpop.f32.mrb[0].mxu0
    %v853 = vpop.f32.mrb[0].mxu0
    %v854 = vadd.f32 0.0, %v853
    %v855 = vpop.f32.mrb[0].mxu0
    %856 = vdwg.mxu0
    %v857 = vadd.f32 %v801, %v851
    %v858 = vadd.f32 %v804, %v854
    %v859 = vpack.c.bf16 %v704, %v701
    %s860 = scalar_lea.vmem [#allocation8], 12
    %v861 = vld [vmem:[%s860] sm:$0xf]
    %v863 = vsel %vm231, %v859, 0
    %v866 = vsel %vm715, %v861, 0
    %868 = vmatprep.subr.bf16.mxu0 0
    %869 = vmatpush1.bf16.msra.mxu0 %v866
    %870 = vmatprep.subr.bf16.mxu0 0
    %871 = vmatpush1.bf16.msra.mxu0 0
    %872 = vmatprep.subr.bf16.mxu0 0
    %873 = vmatpush1.bf16.msra.mxu0 0
    %874 = vmatprep.subr.bf16.mxu0 0
    %875 = vmatpush1.bf16.msra.mxu0 0
    %876 = vmatprep.subr.bf16.mxu0 0
    %877 = vmatpush1.bf16.msra.mxu0 0
    %878 = vmatprep.subr.bf16.mxu0 0
    %879 = vmatpush1.bf16.msra.mxu0 0
    %880 = vmatprep.subr.bf16.mxu0 0
    %881 = vmatpush1.bf16.msra.mxu0 0
    %882 = vmatprep.subr.bf16.mxu0 0
    %883 = vmatpush1.bf16.msra.mxu0 0
    %884 = vmatprep.subr.bf16.mxu0 0
    %885 = vmatpush1.bf16.msra.mxu0 0
    %886 = vmatprep.subr.bf16.mxu0 0
    %887 = vmatpush1.bf16.msra.mxu0 0
    %888 = vmatprep.subr.bf16.mxu0 0
    %889 = vmatpush1.bf16.msra.mxu0 0
    %890 = vmatprep.subr.bf16.mxu0 0
    %891 = vmatpush1.bf16.msra.mxu0 0
    %892 = vmatprep.subr.bf16.mxu0 0
    %893 = vmatpush1.bf16.msra.mxu0 0
    %894 = vmatprep.subr.bf16.mxu0 0
    %895 = vmatpush1.bf16.msra.mxu0 0
    %896 = vmatprep.subr.bf16.mxu0 0
    %897 = vmatpush1.bf16.msra.mxu0 0
    %898 = vmatprep.subr.bf16.mxu0 0
    %899 = vmatpush1.bf16.msra.mxu0 0
    %900 = vmatprep.mubr.bf16.mxu0 0
    %901 = vmatmul.mubr.bf16.gmra.mrb[0].mxu0 %v863
    %v902 = vpop.f32.mrb[0].mxu0
    %v903 = vadd.f32 0.0, %v902
    %v904 = vpop.f32.mrb[0].mxu0
    %v905 = vpop.f32.mrb[0].mxu0
    %v906 = vadd.f32 0.0, %v905
    %v907 = vpop.f32.mrb[0].mxu0
    %908 = vdwg.mxu0
    %v909 = vadd.f32 %v857, %v903
    %v910 = vadd.f32 %v858, %v906
    %v911 = vlaneseq
    %v912 = vshrl.u32 %v911, 7
    %v913 = vsub.s32 1, %v912
    %v914 = vrot.slane %v100, %v913
    %v915 = vadd.f32 %v909, %v914
    %v916 = vadd.f32 %v910, %v914
    %v917 = vadd.f32 %v96, %v915
    %v918 = vadd.f32 %v97, %v916
    %v919 = vsel %vm101, %v917, 0.0
    %920 = vadd.xlane.f32.xlu0 %v919
    %v921 = vpop.xlane.xlu0 %920
    %v922 = vsel %vm101, %v918, 0.0
    %923 = vadd.xlane.f32.xlu0 %v922
    %v924 = vpop.xlane.xlu0 %923
    %v925 = vmul.f32 %v921, %v108
    %v926 = vmul.f32 %v924, %v108
    %v927 = vsub.f32 %v917, %v925
    %v928 = vsub.f32 %v918, %v926
    %v929 = vmul.f32 %v927, %v927
    %v930 = vmul.f32 %v928, %v928
    %v931 = vsel %vm101, %v929, 0.0
    %932 = vadd.xlane.f32.xlu0 %v931
    %v933 = vpop.xlane.xlu0 %932
    %v934 = vsel %vm101, %v930, 0.0
    %935 = vadd.xlane.f32.xlu0 %v934
    %v936 = vpop.xlane.xlu0 %935
    %v937 = vmul.f32 %v933, %v121
    %v938 = vmul.f32 %v936, %v121
    %v939 = vrsqrt.pop %v937
    %v940 = vmul.f32 %v937, %v939
    %vm941 = vcmp.eq.f32.partialorder %v937, inf
    %v942 = vsel %vm941, %v937, %v940
    %vm943 = vcmp.eq.f32.partialorder %v937, 0.0
    %v944 = vand.u32 %v937, 2147483648
    %v945 = vsel %vm943, %v944, %v942
    %v946 = vrsqrt.pop %v938
    %v947 = vmul.f32 %v938, %v946
    %vm948 = vcmp.eq.f32.partialorder %v938, inf
    %v949 = vsel %vm948, %v938, %v947
    %vm950 = vcmp.eq.f32.partialorder %v938, 0.0
    %v951 = vand.u32 %v938, 2147483648
    %v952 = vsel %vm950, %v951, %v949
    %v953 = vadd.f32 %v945, 1e-06
    %v954 = vadd.f32 %v952, 1e-06
    %v955 = vrcp.pop %v953
    %v956 = vrcp.pop %v954
    %v957 = vlaneseq
    %v958 = vshrl.u32 %v957, 7
    %v959 = vsub.s32 6, %v958
    %v960 = vrot.slane %v100, %v959
    %v961 = vmul.f32 %v960, %v927
    %v962 = vmul.f32 %v960, %v928
    %v963 = vmul.f32 %v961, %v955
    %v964 = vmul.f32 %v962, %v956
    %v965 = vlaneseq
    %v966 = vshrl.u32 %v965, 7
    %v967 = vsub.s32 7, %v966
    %v968 = vrot.slane %v100, %v967
    %v969 = vadd.f32 %v963, %v968
    %v970 = vadd.f32 %v964, %v968
    %v971 = vpack.c.bf16 %v970, %v969
    %v972 = vld [vmem:[%s4] sm:$0xf]
    %v973 = vld [vmem:[%s4 + $0x4] sm:$0xf]
    %v974 = vld [vmem:[%s4 + $0x8] sm:$0xf]
    %v975 = vld [vmem:[%s4 + $0xc] sm:$0xf]
    %v976 = vlaneseq
    %v977 = vshrl.u32 %v976, 7
    %v978 = vsub.s32 4, %v977
    %v979 = vrot.slane %v100, %v978
    %v984 = vunpack.c.l.b16 %v972
    %v985 = vunpack.c.l.b16 %v973
    %v986 = vunpack.c.l.b16 %v974
    %v987 = vunpack.c.l.b16 %v975
    %v988 = vpack.c.b16 %v985, %v984
    %v989 = vpack.c.b16 %v987, %v986
    %v993 = vsel %vm101, %v971, 0
    %995 = vmatprep.subr.bf16.mxu0 0
    %996 = vmatpush1.bf16.msra.mxu0 %v988
    %997 = vmatprep.subr.bf16.mxu0 0
    %998 = vmatpush1.bf16.msra.mxu0 %v989
    %999 = vmatprep.subr.bf16.mxu0 0
    %1000 = vmatpush1.bf16.msra.mxu0 0
    %1001 = vmatprep.subr.bf16.mxu0 0
    %1002 = vmatpush1.bf16.msra.mxu0 0
    %1003 = vmatprep.subr.bf16.mxu0 0
    %1004 = vmatpush1.bf16.msra.mxu0 0
    %1005 = vmatprep.subr.bf16.mxu0 0
    %1006 = vmatpush1.bf16.msra.mxu0 0
    %1007 = vmatprep.subr.bf16.mxu0 0
    %1008 = vmatpush1.bf16.msra.mxu0 0
    %1009 = vmatprep.subr.bf16.mxu0 0
    %1010 = vmatpush1.bf16.msra.mxu0 0
    %1011 = vmatprep.subr.bf16.mxu0 0
    %1012 = vmatpush1.bf16.msra.mxu0 0
    %1013 = vmatprep.subr.bf16.mxu0 0
    %1014 = vmatpush1.bf16.msra.mxu0 0
    %1015 = vmatprep.subr.bf16.mxu0 0
    %1016 = vmatpush1.bf16.msra.mxu0 0
    %1017 = vmatprep.subr.bf16.mxu0 0
    %1018 = vmatpush1.bf16.msra.mxu0 0
    %1019 = vmatprep.subr.bf16.mxu0 0
    %1020 = vmatpush1.bf16.msra.mxu0 0
    %1021 = vmatprep.subr.bf16.mxu0 0
    %1022 = vmatpush1.bf16.msra.mxu0 0
    %1023 = vmatprep.subr.bf16.mxu0 0
    %1024 = vmatpush1.bf16.msra.mxu0 0
    %1025 = vmatprep.subr.bf16.mxu0 0
    %1026 = vmatpush1.bf16.msra.mxu0 0
    %1027 = vmatprep.mubr.bf16.mxu0 0
    %1028 = vmatmul.mubr.bf16.gmra.mrb[0].mxu0 %v993
    %v1029 = vpop.f32.mrb[0].mxu0
    %v1030 = vadd.f32 %v979, %v1029
    %v1031 = vpop.f32.mrb[0].mxu0
    %v1032 = vpop.f32.mrb[0].mxu0
    %v1033 = vadd.f32 %v979, %v1032
    %v1034 = vpop.f32.mrb[0].mxu0
    %1035 = vdwg.mxu0
    %v1036 = vmul.f32 %v1030, 0.5
    %v1037 = vmul.f32 %v1033, 0.5
    %v1038 = vmul.f32 %v1030, 0.044715
    %v1039 = vmul.f32 %v1033, 0.044715
    %v1040 = vmul.f32 %v1038, %v1030
    %v1041 = vmul.f32 %v1039, %v1033
    %v1042 = vmul.f32 %v1040, %v1030
    %v1043 = vmul.f32 %v1041, %v1033
    %v1044 = vadd.f32 %v1030, %v1042
    %v1045 = vadd.f32 %v1033, %v1043
    %v1046 = vmul.f32 %v1044, 0.7978846
    %v1047 = vmul.f32 %v1045, 0.7978846
    %v1048 = vtanh.pop %v1046
    %v1049 = vtanh.pop %v1047
    %v1050 = vadd.f32 %v1048, 1.0
    %v1051 = vadd.f32 %v1049, 1.0
    %v1052 = vmul.f32 %v1036, %v1050
    %v1053 = vmul.f32 %v1037, %v1051
    %v1054 = vpack.c.bf16 %v1053, %v1052
    %v1055 = vld [vmem:[#allocation10] sm:$0xf]
    %v1056 = vld [vmem:[#allocation10 + $0x4] sm:$0xf]
    %v1057 = vld [vmem:[#allocation10 + $0x8] sm:$0xf]
    %v1058 = vld [vmem:[#allocation10 + $0xc] sm:$0xf]
    %v1059 = vld [vmem:[#allocation10 + $0x10] sm:$0xf]
    %v1060 = vld [vmem:[#allocation10 + $0x14] sm:$0xf]
    %v1061 = vld [vmem:[#allocation10 + $0x18] sm:$0xf]
    %v1062 = vld [vmem:[#allocation10 + $0x1c] sm:$0xf]
    %v1063 = vld [vmem:[#allocation10 + $0x20] sm:$0xf]
    %v1064 = vld [vmem:[#allocation10 + $0x24] sm:$0xf]
    %v1065 = vld [vmem:[#allocation10 + $0x28] sm:$0xf]
    %v1066 = vld [vmem:[#allocation10 + $0x2c] sm:$0xf]
    %v1067 = vld [vmem:[#allocation10 + $0x30] sm:$0xf]
    %v1068 = vld [vmem:[#allocation10 + $0x34] sm:$0xf]
    %v1069 = vld [vmem:[#allocation10 + $0x38] sm:$0xf]
    %v1070 = vld [vmem:[#allocation10 + $0x3c] sm:$0xf]
    %v1071 = vlaneseq
    %v1072 = vshrl.u32 %v1071, 7
    %v1073 = vsub.s32 5, %v1072
    %v1074 = vrot.slane %v100, %v1073
    %v1091 = vunpack.c.l.b16 %v1055
    %v1092 = vunpack.c.l.b16 %v1056
    %v1093 = vunpack.c.l.b16 %v1057
    %v1094 = vunpack.c.l.b16 %v1058
    %v1095 = vunpack.c.l.b16 %v1059
    %v1096 = vunpack.c.l.b16 %v1060
    %v1097 = vunpack.c.l.b16 %v1061
    %v1098 = vunpack.c.l.b16 %v1062
    %v1099 = vunpack.c.l.b16 %v1063
    %v1100 = vunpack.c.l.b16 %v1064
    %v1101 = vunpack.c.l.b16 %v1065
    %v1102 = vunpack.c.l.b16 %v1066
    %v1103 = vunpack.c.l.b16 %v1067
    %v1104 = vunpack.c.l.b16 %v1068
    %v1105 = vunpack.c.l.b16 %v1069
    %v1106 = vunpack.c.l.b16 %v1070
    %v1107 = vpack.c.b16 %v1092, %v1091
    %v1108 = vpack.c.b16 %v1094, %v1093
    %v1109 = vpack.c.b16 %v1096, %v1095
    %v1110 = vpack.c.b16 %v1098, %v1097
    %v1111 = vpack.c.b16 %v1100, %v1099
    %v1112 = vpack.c.b16 %v1102, %v1101
    %v1113 = vpack.c.b16 %v1104, %v1103
    %v1114 = vpack.c.b16 %v1106, %v1105
    %1123 = vmatprep.subr.bf16.mxu0 0
    %1124 = vmatpush1.bf16.msra.mxu0 %v1107
    %1125 = vmatprep.subr.bf16.mxu0 0
    %1126 = vmatpush1.bf16.msra.mxu0 %v1108
    %1127 = vmatprep.subr.bf16.mxu0 0
    %1128 = vmatpush1.bf16.msra.mxu0 %v1109
    %1129 = vmatprep.subr.bf16.mxu0 0
    %1130 = vmatpush1.bf16.msra.mxu0 %v1110
    %1131 = vmatprep.subr.bf16.mxu0 0
    %1132 = vmatpush1.bf16.msra.mxu0 %v1111
    %1133 = vmatprep.subr.bf16.mxu0 0
    %1134 = vmatpush1.bf16.msra.mxu0 %v1112
    %1135 = vmatprep.subr.bf16.mxu0 0
    %1136 = vmatpush1.bf16.msra.mxu0 %v1113
    %1137 = vmatprep.subr.bf16.mxu0 0
    %1138 = vmatpush1.bf16.msra.mxu0 %v1114
    %1139 = vmatprep.subr.bf16.mxu0 0
    %1140 = vmatpush1.bf16.msra.mxu0 0
    %1141 = vmatprep.subr.bf16.mxu0 0
    %1142 = vmatpush1.bf16.msra.mxu0 0
    %1143 = vmatprep.subr.bf16.mxu0 0
    %1144 = vmatpush1.bf16.msra.mxu0 0
    %1145 = vmatprep.subr.bf16.mxu0 0
    %1146 = vmatpush1.bf16.msra.mxu0 0
    %1147 = vmatprep.subr.bf16.mxu0 0
    %1148 = vmatpush1.bf16.msra.mxu0 0
    %1149 = vmatprep.subr.bf16.mxu0 0
    %1150 = vmatpush1.bf16.msra.mxu0 0
    %1151 = vmatprep.subr.bf16.mxu0 0
    %1152 = vmatpush1.bf16.msra.mxu0 0
    %1153 = vmatprep.subr.bf16.mxu0 0
    %1154 = vmatpush1.bf16.msra.mxu0 0
    %1155 = vmatprep.mubr.bf16.mxu0 0
    %1156 = vmatmul.mubr.bf16.gmra.mrb[0].mxu0 %v1054
    %v1157 = vpop.f32.mrb[0].mxu0
    %v1158 = vadd.f32 %v1074, %v1157
    %v1159 = vpop.f32.mrb[0].mxu0
    %v1160 = vpop.f32.mrb[0].mxu0
    %v1161 = vadd.f32 %v1074, %v1160
    %v1162 = vpop.f32.mrb[0].mxu0
    %1163 = vdwg.mxu0
    %v1164 = vadd.f32 %v917, %v1158
    %v1165 = vadd.f32 %v918, %v1161
    %1166 = vst.msk [vmem:[#allocation11] sm:$0xff] %vm101, %v1164
    %1167 = vst.msk [vmem:[#allocation11 + $0x8] sm:$0xff] %vm101, %v1165
    // Predicated region
    $region50: #{forward.1} parent=1 // pred_check
      _
    $region51: #{forward.1} parent=1 // pred_check_branch
      %1169 = sbr.rel (0) target = $region53
    $region52: #{forward.1} parent=1 // pred_region
      %s1171 = ssub.s32 256, 256
      %1172 = vsyncadd [#allocation4], %s1171
      %s1173 = sshll.u32 [#allocation11], 4
      %s1174 = int_to_ptr.vmem [resolvable:$true] %s1173
      %1179 = dma.vmem_to_hbm [thread:$0]  %s1174, 256, %s7, [#allocation4], 128, 128, 8
    $region53: #{forward.1} parent=1 // pred_fallthru
      _
    // Predicated region
    $region54: #{forward.1} parent=1 // pred_check
      _
    $region55: #{forward.1} parent=1 // pred_check_branch
      %1181 = sbr.rel (0) target = $region57
    $region56: #{forward.1} parent=1 // pred_region
      %1182 = dma.done [#allocation4], 256
    $region57: #{forward.1} parent=1 // pred_fallthru
      _
    %1183 = vsyncpa [#allocation3], 1
    %1184 = vsyncpa [#allocation6], 1
    %1185 = vsyncpa [#allocation9], 1
    %1186 = vsyncpa [#allocation4], 1

</llo_original>
